<compile_context>
chip_gen: v7x
topology: tpu7x:2x2x1
jax: 0.10.0
libtpu: 0.0.40
codegen_flags: <defaults>
</compile_context>

<pallas_src>
import functools

import jax
import jax.numpy as jnp
import numpy as np
from jax.experimental import pallas as pl
from jax.experimental.pallas import tpu as pltpu


# --------------------------------------------------------------------------- #
# Hardware-aware sizing helpers
# --------------------------------------------------------------------------- #
def _vmem_capacity_bytes():
    """Per-TensorCore VMEM capacity; conservative 64 MiB (v7x) fallback."""
    try:
        info = pltpu.get_tpu_info()
        return int(getattr(info, "vmem_capacity_bytes", 64 << 20))
    except Exception:
        return 64 << 20


def _vmem_limit_bytes():
    return max(32 << 20, (_vmem_capacity_bytes() * 3) // 4)


def _default_block_b(B, H, W, Cin, Cmid, Cout):
    """Largest divisor of B whose per-step working set fits a conservative VMEM
    budget while keeping >= min(B, 8) grid steps (so each TensorCore still has
    iterations to software-pipeline when the grid is split across cores)."""
    budget = _vmem_capacity_bytes() // 3
    min_steps = min(B, 8)
    best = 1
    for bb in range(1, B + 1):
        if B % bb or (B // bb) < min_steps:
            continue
        x_blk = bb * H * W * Cin * 4
        o_blk = bb * H * W * Cout * 4
        scratch = bb * (H + 2) * W * Cin * 4
        live = bb * H * W * (Cin + 4 * Cmid) * 4
        if 2 * x_blk + 2 * o_blk + scratch + live <= budget:
            best = bb
    return best


# --------------------------------------------------------------------------- #
# Kernel
# --------------------------------------------------------------------------- #
def _cascade_kernel(norm_rescale,
                    x_ref, mean_ref, std_ref,
                    fc1w_ref, fc1b_ref, fc2w_ref, fc2b_ref,
                    agap_ref, tile_ref, bigw_ref, bigw3_ref, bias_ref,
                    out_ref, xpad_ref):
    Bblk, H, WCin = x_ref.shape
    M = Bblk * H

    x = x_ref[...]                                     # (Bblk, H, W*Cin), f32, lane-dense
    x2d = x.reshape(M, WCin)                           # leading-dim collapse only (no relayout)

    # ---- proj_to_rescale: AdaptiveAvgPool2d -> Flatten -> Dropout(id) -> Linear -> ReLU
    # GAP over W is a structured averaging matmul (1/HW folded in); the H sum is a tiny reduce.
    gap = jnp.dot(x2d, agap_ref[...], preferred_element_type=jnp.float32)   # (M, Cin)
    gap = jnp.sum(gap.reshape(Bblk, H, -1), axis=1)                         # (Bblk, Cin)
    r = jnp.dot(gap, fc1w_ref[...], preferred_element_type=jnp.float32) + fc1b_ref[...]
    r = jnp.maximum(r, 0.0)                                                 # (Bblk, msd)

    if norm_rescale:                                   # F.normalize(dim=-1); rsqrt -> EUP slot
        ss = jnp.sum(r * r, axis=-1, keepdims=True)
        r = r * jax.lax.rsqrt(jnp.maximum(ss, 1e-24))

    # ---- rescale_vec * std + mean, then proj_from_rescale: Dropout(id) -> Linear -> ReLU
    r = r * std_ref[...].reshape(Bblk, -1) + mean_ref[...].reshape(Bblk, -1)
    r = jnp.dot(r, fc2w_ref[...], preferred_element_type=jnp.float32) + fc2b_ref[...]
    r = jnp.maximum(r, 0.0)                                                 # (Bblk, Cin)

    # ---- x_in = x_in * rescale_vec : broadcast r across the W-tiled lanes via a tiny
    #      structured matmul, then a single full-block VPU multiply (stays in rows layout).
    r_wide = jnp.dot(r, tile_ref[...], preferred_element_type=jnp.float32)  # (Bblk, W*Cin)
    xs = x * r_wide[:, None, :]                                             # (Bblk, H, W*Cin)

    # ---- conv_block ('resnet'): the 1x1 conv + BN1 are folded into banded composite 3x3
    #      weights wrapper-side.  W-direction zero padding is inside the banded weights;
    #      H-direction padding comes from the 2 halo rows of the scratch.  Only the halo
    #      rows are zeroed (interior fully overwritten each step); they are re-zeroed every
    #      step because with "parallel" megacore splitting the second core never sees step 0.
    xpad_ref[:, 0:1, :] = jnp.zeros((Bblk, 1, WCin), jnp.float32)
    xpad_ref[:, H + 1:H + 2, :] = jnp.zeros((Bblk, 1, WCin), jnp.float32)
    xpad_ref[:, 1:H + 1, :] = xs

    # Three banded matmuls (one per kernel row dy), K = W*Cin, bf16 operands, f32 accumulate.
    acc = jnp.dot(xpad_ref[:, 0:H, :].reshape(M, WCin).astype(jnp.bfloat16), bigw_ref[0],
                  preferred_element_type=jnp.float32)
    acc = acc + jnp.dot(xpad_ref[:, 1:H + 1, :].reshape(M, WCin).astype(jnp.bfloat16),
                        bigw_ref[1], preferred_element_type=jnp.float32)
    acc = acc + jnp.dot(xpad_ref[:, 2:H + 2, :].reshape(M, WCin).astype(jnp.bfloat16),
                        bigw_ref[2], preferred_element_type=jnp.float32)    # (M, W*Cmid)

    # ---- final 1x1 conv + BN3 as a block-diagonal matmul; all BN biases (border-aware)
    #      folded into one (H, W*Cout) bias map; ReLU; lane-dense store, no padding.
    h3 = jnp.dot(acc.astype(jnp.bfloat16), bigw3_ref[...],
                 preferred_element_type=jnp.float32)                        # (M, W*Cout)
    y = h3.reshape(Bblk, H, -1) + bias_ref[...][None, :, :]
    out_ref[...] = jnp.maximum(y, 0.0)


# --------------------------------------------------------------------------- #
# Wrapper: builds the structured weights and calls the kernel
# --------------------------------------------------------------------------- #
def cascade_rescale_block(x, mean, std, params, norm_rescale=False, block_b=None):
    """x: (B, H, W, Cin) NHWC; mean, std: (B, mean_std_dim).  Returns (B, H, W, Cout)."""
    B, H, W, Cin = x.shape
    msd = params["fc1_w"].shape[1]
    Cmid = params["w1"].shape[1]
    Cout = params["w3"].shape[1]
    WCin, WCm, WCout = W * Cin, W * Cmid, W * Cout

    # ---- fold BN scales into conv weights
    w1s = params["w1"] * params["bn1_s"]                                   # (Cin, Cmid)
    w2s = (params["w2_flat"] * params["bn2_s"]).reshape(3, 3, Cmid, Cmid)  # (dy, dx, mid_in, mid_out)
    w3s = params["w3"] * params["bn3_s"]                                   # (Cmid, Cout)

    # Composite 1x1·3x3 tap weights: Wcomp[dy, dx, c, m] = sum_n w1s[c,n] * w2s[dy,dx,n,m]
    wcomp = jnp.einsum("cn,yxnm->yxcm", w1s, w2s)                          # (3, 3, Cin, Cmid)

    # Banded weights over the flattened row: BigW[dy, xin*Cin+c, xout*Cmid+m]; the W-border
    # zero padding is encoded by omitted (zero) bands.
    sel = np.zeros((3, W, W), np.float32)                                  # [dx, x_in, x_out]
    for dx in range(3):
        xo = np.arange(W)
        xi = xo + dx - 1
        ok = (xi >= 0) & (xi < W)
        sel[dx, xi[ok], xo[ok]] = 1.0
    bigw = jnp.einsum("xio,yxcm->yicom", jnp.asarray(sel), wcomp)
    bigw = bigw.reshape(3, WCin, WCm).astype(jnp.bfloat16)

    # Block-diagonal final 1x1 conv over the flattened row.
    bigw3 = jnp.einsum("pq,mo->pmqo", jnp.eye(W, dtype=jnp.float32), w3s)
    bigw3 = bigw3.reshape(WCm, WCout).astype(jnp.bfloat16)

    # Border-aware bias map: bn1_b routed through the valid 3x3 taps + bn2_b, then folded
    # through the (scaled) last 1x1 conv and bn3_b.  (H, W*Cout), added once before ReLU.
    yo = np.arange(H)[:, None, None, None]
    xo = np.arange(W)[None, :, None, None]
    dyi = np.arange(3)[None, None, :, None]
    dxi = np.arange(3)[None, None, None, :]
    valid = (((yo + dyi - 1) >= 0) & ((yo + dyi - 1) < H) &
             ((xo + dxi - 1) >= 0) & ((xo + dxi - 1) < W)).astype(np.float32)     # (H, W, 3, 3)
    tap_bias = jnp.einsum("n,yxnm->yxm", params["bn1_b"].reshape(-1), w2s)        # (3, 3, Cmid)
    bias_map = (jnp.einsum("hwyx,yxm->hwm", jnp.asarray(valid), tap_bias)
                + params["bn2_b"].reshape(1, 1, Cmid))                            # (H, W, Cmid)
    bias_out = (jnp.einsum("hwm,mo->hwo", bias_map, w3s)
                + params["bn3_b"].reshape(1, 1, Cout)).reshape(H, WCout)          # (H, W*Cout)

    # GAP averaging matrix (1/HW folded in) and the r -> W-tiled-lane broadcast matrix.
    a_gap = jnp.tile(jnp.eye(Cin, dtype=jnp.float32), (W, 1)) / float(H * W)      # (W*Cin, Cin)
    tile_m = jnp.tile(jnp.eye(Cin, dtype=jnp.float32), (1, W))                    # (Cin, W*Cin)

    # Flattened-rows views (free bitcast reshapes in XLA).
    x_rows = x.reshape(B, H, WCin)
    mean3 = mean.reshape(B, 1, msd)
    std3 = std.reshape(B, 1, msd)

    if block_b is None:
        block_b = _default_block_b(B, H, W, Cin, Cmid, Cout)
    assert B % block_b == 0, "batch must be divisible by block_b"
    steps = B // block_b

    def const_spec(shape):
        zeros = (0,) * len(shape)
        return pl.BlockSpec(shape, lambda g, z=zeros: z)

    in_specs = [
        pl.BlockSpec((block_b, H, WCin), lambda g: (g, 0, 0)),
        pl.BlockSpec((block_b, 1, msd), lambda g: (g, 0, 0)),
        pl.BlockSpec((block_b, 1, msd), lambda g: (g, 0, 0)),
        const_spec((Cin, msd)), const_spec((1, msd)),
        const_spec((msd, Cin)), const_spec((1, Cin)),
        const_spec((WCin, Cin)), const_spec((Cin, WCin)),
        const_spec((3, WCin, WCm)), const_spec((WCm, WCout)),
        const_spec((H, WCout)),
    ]
    out_spec = pl.BlockSpec((block_b, H, WCout), lambda g: (g, 0, 0))

    const_operands = (params["fc1_w"], params["fc1_b"], params["fc2_w"], params["fc2_b"],
                      a_gap, tile_m, bigw, bigw3, bias_out)
    weight_bytes = sum(int(a.size) * int(jnp.dtype(a.dtype).itemsize) for a in const_operands)
    flops = (2 * B * H * (WCin * Cin + 3 * WCin * WCm + WCm * WCout)
             + 2 * B * (Cin * msd + msd * Cin + Cin * WCin))
    bytes_accessed = ((x_rows.size + mean.size + std.size) * 4
                      + B * H * WCout * 4 + steps * weight_bytes)
    cost = pl.CostEstimate(flops=int(flops),
                           transcendentals=int(B if norm_rescale else 0),
                           bytes_accessed=int(bytes_accessed))

    kernel = functools.partial(_cascade_kernel, norm_rescale)
    out_rows = pl.pallas_call(
        kernel,
        out_shape=jax.ShapeDtypeStruct((B, H, WCout), jnp.float32),
        grid_spec=pltpu.PrefetchScalarGridSpec(
            num_scalar_prefetch=0,
            grid=(steps,),
            in_specs=in_specs,
            out_specs=out_spec,
            scratch_shapes=[pltpu.VMEM((block_b, H + 2, WCin), jnp.float32)],
        ),
        compiler_params=pltpu.CompilerParams(
            dimension_semantics=("parallel",),
            vmem_limit_bytes=_vmem_limit_bytes(),
        ),
        cost_estimate=cost,
    )(x_rows, mean3, std3,
      params["fc1_w"], params["fc1_b"], params["fc2_w"], params["fc2_b"],
      a_gap, tile_m, bigw, bigw3, bias_out)

    return out_rows.reshape(B, H, W, Cout)


# --------------------------------------------------------------------------- #
# Synthetic parameters + pure-JAX reference
# --------------------------------------------------------------------------- #
def init_params(key, Cin, Cout, msd, ratio=4):
    """Deterministic synthetic parameters (BatchNorm folded to scale/bias)."""
    Cmid = Cin // ratio
    ks = jax.random.split(key, 20)

    def rnd(k, shape, scale=0.15):
        return scale * jax.random.normal(k, shape, jnp.float32)

    def bn_fold(kg, kb, km, kv, C, eps=1e-5):
        gamma = 1.0 + 0.1 * jax.random.normal(kg, (1, C), jnp.float32)
        beta = 0.1 * jax.random.normal(kb, (1, C), jnp.float32)
        rmean = 0.1 * jax.random.normal(km, (1, C), jnp.float32)
        rvar = jnp.abs(jax.random.normal(kv, (1, C), jnp.float32)) + 0.5
        scale = gamma / jnp.sqrt(rvar + eps)
        bias = beta - rmean * scale
        return scale, bias

    params = {
        "fc1_w": rnd(ks[0], (Cin, msd)),          # Linear(in_channels, mean_std_dim)
        "fc1_b": rnd(ks[1], (1, msd)),
        "fc2_w": rnd(ks[2], (msd, Cin)),          # Linear(mean_std_dim, in_channels)
        "fc2_b": rnd(ks[3], (1, Cin)),
        "w1": rnd(ks[4], (Cin, Cmid)),            # 1x1 conv
        "w2_flat": rnd(ks[5], (9 * Cmid, Cmid)),  # 3x3 conv, taps stacked along rows
        "w3": rnd(ks[6], (Cmid, Cout)),           # 1x1 conv
    }
    params["bn1_s"], params["bn1_b"] = bn_fold(ks[7], ks[8], ks[9], ks[10], Cmid)
    params["bn2_s"], params["bn2_b"] = bn_fold(ks[11], ks[12], ks[13], ks[14], Cmid)
    params["bn3_s"], params["bn3_b"] = bn_fold(ks[15], ks[16], ks[17], ks[18], Cout)
    return params


def reference(x, mean, std, p, norm_rescale=False):
    """Pure-JAX NHWC reference of the PyTorch forward (inference mode)."""
    B, H, W, Cin = x.shape
    Cmid = p["w1"].shape[1]
    gap = x.mean(axis=(1, 2))                                        # (B, Cin)
    r = jax.nn.relu(gap @ p["fc1_w"] + p["fc1_b"])
    if norm_rescale:
        r = r / jnp.maximum(jnp.linalg.norm(r, axis=-1, keepdims=True), 1e-12)
    r = r * std + mean
    r = jax.nn.relu(r @ p["fc2_w"] + p["fc2_b"])
    xs = x * r[:, None, None, :]
    h1 = jnp.einsum("bhwc,cm->bhwm", xs, p["w1"]) * p["bn1_s"] + p["bn1_b"]
    padded = jnp.pad(h1, ((0, 0), (1, 1), (1, 1), (0, 0)))
    w2 = p["w2_flat"].reshape(3, 3, Cmid, Cmid)
    h2 = jnp.zeros_like(h1)
    for dy in range(3):
        for dx in range(3):
            h2 = h2 + jnp.einsum("bhwc,cm->bhwm",
                                 padded[:, dy:dy + H, dx:dx + W, :], w2[dy, dx])
    h2 = h2 * p["bn2_s"] + p["bn2_b"]
    h3 = jnp.einsum("bhwc,cm->bhwm", h2, p["w3"]) * p["bn3_s"] + p["bn3_b"]
    return jax.nn.relu(h3)


# TODO(synk): only the 'resnet' conv_block branch and inference-mode Dropout/BatchNorm are
#             implemented (training-mode batch statistics have no clean fused equivalent here).
if __name__ == "__main__":
    # in_channels=16, conv=('resnet', 4) -> mid=4, out_channels=8, mean_std_dim=in_channels.
    B, H, W = 4, 16, 16
    Cin, Cout, msd = 16, 8, 16

    key = jax.random.PRNGKey(0)
    kx, km, ksd, kp = jax.random.split(key, 4)
    x = jax.random.normal(kx, (B, H, W, Cin), jnp.float32)       # NHWC
    mean = 0.5 * jax.random.normal(km, (B, msd), jnp.float32)
    std = 1.0 + 0.1 * jax.random.normal(ksd, (B, msd), jnp.float32)
    params = init_params(kp, Cin, Cout, msd, ratio=4)

    out = jax.block_until_ready(cascade_rescale_block(x, mean, std, params, norm_rescale=False))
    ref = reference(x, mean, std, params, norm_rescale=False)
    assert out.shape == (B, H, W, Cout)
    assert bool(jnp.allclose(out, ref, atol=1e-2, rtol=1e-2)), "mismatch vs reference"

    out_n = jax.block_until_ready(cascade_rescale_block(x, mean, std, params, norm_rescale=True))
    ref_n = reference(x, mean, std, params, norm_rescale=True)
    assert bool(jnp.allclose(out_n, ref_n, atol=1e-2, rtol=1e-2)), "mismatch vs reference (norm)"

    print("KERNEL_OK")
</pallas_src>

<mosaic_0001>
module attributes {stable_mosaic.version = 11 : i64} {
  func.func @_cascade_kernel(%arg0: i32, %arg1: memref<1x16x256xf32, #tpu.memory_space<vmem>>, %arg2: memref<1x1x16xf32, #tpu.memory_space<vmem>>, %arg3: memref<1x1x16xf32, #tpu.memory_space<vmem>>, %arg4: memref<16x16xf32, #tpu.memory_space<vmem>>, %arg5: memref<1x16xf32, #tpu.memory_space<vmem>>, %arg6: memref<16x16xf32, #tpu.memory_space<vmem>>, %arg7: memref<1x16xf32, #tpu.memory_space<vmem>>, %arg8: memref<256x16xf32, #tpu.memory_space<vmem>>, %arg9: memref<16x256xf32, #tpu.memory_space<vmem>>, %arg10: memref<3x256x64xbf16, #tpu.memory_space<vmem>>, %arg11: memref<64x128xbf16, #tpu.memory_space<vmem>>, %arg12: memref<16x128xf32, #tpu.memory_space<vmem>>, %arg13: memref<1x16x128xf32, #tpu.memory_space<vmem>>, %arg14: memref<1x18x256xf32, #tpu.memory_space<vmem>>) attributes {dimension_semantics = [#tpu.dimension_semantics<parallel>], iteration_bounds = array<i64: 4>, scalar_prefetch = 0 : i64, scratch_operands = 1 : i64, tpu.core_type = #tpu.core_type<tc>, window_params = [{transform_indices = @transform_0, window_bounds = array<i64: 1, 16, 256>}, {transform_indices = @transform_1, window_bounds = array<i64: 1, 1, 16>}, {transform_indices = @transform_2, window_bounds = array<i64: 1, 1, 16>}, {pipeline_mode = #tpu.pipeline_mode<synchronous>, transform_indices = @transform_3, window_bounds = array<i64: 16, 16>}, {pipeline_mode = #tpu.pipeline_mode<synchronous>, transform_indices = @transform_4, window_bounds = array<i64: 1, 16>}, {pipeline_mode = #tpu.pipeline_mode<synchronous>, transform_indices = @transform_5, window_bounds = array<i64: 16, 16>}, {pipeline_mode = #tpu.pipeline_mode<synchronous>, transform_indices = @transform_6, window_bounds = array<i64: 1, 16>}, {pipeline_mode = #tpu.pipeline_mode<synchronous>, transform_indices = @transform_7, window_bounds = array<i64: 256, 16>}, {pipeline_mode = #tpu.pipeline_mode<synchronous>, transform_indices = @transform_8, window_bounds = array<i64: 16, 256>}, {pipeline_mode = #tpu.pipeline_mode<synchronous>, transform_indices = @transform_9, window_bounds = array<i64: 3, 256, 64>}, {pipeline_mode = #tpu.pipeline_mode<synchronous>, transform_indices = @transform_10, window_bounds = array<i64: 64, 128>}, {pipeline_mode = #tpu.pipeline_mode<synchronous>, transform_indices = @transform_11, window_bounds = array<i64: 16, 128>}, {transform_indices = @transform_12, window_bounds = array<i64: 1, 16, 128>}]} {
    %c0 = arith.constant 0 : index
    %c0_0 = arith.constant 0 : index
    %c0_1 = arith.constant 0 : index
    %0 = vector.load %arg1[%c0, %c0_0, %c0_1] : memref<1x16x256xf32, #tpu.memory_space<vmem>>, vector<1x16x256xf32>
    %1 = vector.shape_cast %0 : vector<1x16x256xf32> to vector<16x256xf32>
    %c0_2 = arith.constant 0 : index
    %c0_3 = arith.constant 0 : index
    %2 = vector.load %arg8[%c0_2, %c0_3] : memref<256x16xf32, #tpu.memory_space<vmem>>, vector<256x16xf32>
    %cst = arith.constant dense<0.000000e+00> : vector<16x16xf32>
    %3 = tpu.matmul %1, %2, %cst {dimension_numbers = #tpu.dot_dimension_numbers<[1], [0], [0], [1], [0, 0, 1, 1], [], []>} : vector<16x256xf32>, vector<256x16xf32>, vector<16x16xf32> -> vector<16x16xf32>
    %4 = vector.shape_cast %3 : vector<16x16xf32> to vector<1x16x16xf32>
    %cst_4 = arith.constant dense<0.000000e+00> : vector<1x16xf32>
    %5 = vector.multi_reduction <add>, %4, %cst_4 [1] : vector<1x16x16xf32> to vector<1x16xf32>
    %c0_5 = arith.constant 0 : index
    %c0_6 = arith.constant 0 : index
    %6 = vector.load %arg4[%c0_5, %c0_6] : memref<16x16xf32, #tpu.memory_space<vmem>>, vector<16x16xf32>
    %cst_7 = arith.constant dense<0.000000e+00> : vector<1x16xf32>
    %7 = tpu.matmul %5, %6, %cst_7 {dimension_numbers = #tpu.dot_dimension_numbers<[1], [0], [0], [1], [0, 0, 1, 1], [], []>} : vector<1x16xf32>, vector<16x16xf32>, vector<1x16xf32> -> vector<1x16xf32>
    %c0_8 = arith.constant 0 : index
    %c0_9 = arith.constant 0 : index
    %8 = vector.load %arg5[%c0_8, %c0_9] : memref<1x16xf32, #tpu.memory_space<vmem>>, vector<1x16xf32>
    %9 = arith.addf %7, %8 : vector<1x16xf32>
    %cst_10 = arith.constant 0.000000e+00 : f32
    %10 = vector.broadcast %cst_10 : f32 to vector<1x16xf32>
    %11 = arith.maximumf %9, %10 : vector<1x16xf32>
    %c0_11 = arith.constant 0 : index
    %c0_12 = arith.constant 0 : index
    %c0_13 = arith.constant 0 : index
    %12 = vector.load %arg3[%c0_11, %c0_12, %c0_13] : memref<1x1x16xf32, #tpu.memory_space<vmem>>, vector<1x1x16xf32>
    %13 = vector.shape_cast %12 : vector<1x1x16xf32> to vector<1x16xf32>
    %14 = arith.mulf %11, %13 : vector<1x16xf32>
    %c0_14 = arith.constant 0 : index
    %c0_15 = arith.constant 0 : index
    %c0_16 = arith.constant 0 : index
    %15 = vector.load %arg2[%c0_14, %c0_15, %c0_16] : memref<1x1x16xf32, #tpu.memory_space<vmem>>, vector<1x1x16xf32>
    %16 = vector.shape_cast %15 : vector<1x1x16xf32> to vector<1x16xf32>
    %17 = arith.addf %14, %16 : vector<1x16xf32>
    %c0_17 = arith.constant 0 : index
    %c0_18 = arith.constant 0 : index
    %18 = vector.load %arg6[%c0_17, %c0_18] : memref<16x16xf32, #tpu.memory_space<vmem>>, vector<16x16xf32>
    %cst_19 = arith.constant dense<0.000000e+00> : vector<1x16xf32>
    %19 = tpu.matmul %17, %18, %cst_19 {dimension_numbers = #tpu.dot_dimension_numbers<[1], [0], [0], [1], [0, 0, 1, 1], [], []>} : vector<1x16xf32>, vector<16x16xf32>, vector<1x16xf32> -> vector<1x16xf32>
    %c0_20 = arith.constant 0 : index
    %c0_21 = arith.constant 0 : index
    %20 = vector.load %arg7[%c0_20, %c0_21] : memref<1x16xf32, #tpu.memory_space<vmem>>, vector<1x16xf32>
    %21 = arith.addf %19, %20 : vector<1x16xf32>
    %cst_22 = arith.constant 0.000000e+00 : f32
    %22 = vector.broadcast %cst_22 : f32 to vector<1x16xf32>
    %23 = arith.maximumf %21, %22 : vector<1x16xf32>
    %c0_23 = arith.constant 0 : index
    %c0_24 = arith.constant 0 : index
    %24 = vector.load %arg9[%c0_23, %c0_24] : memref<16x256xf32, #tpu.memory_space<vmem>>, vector<16x256xf32>
    %cst_25 = arith.constant dense<0.000000e+00> : vector<1x256xf32>
    %25 = tpu.matmul %23, %24, %cst_25 {dimension_numbers = #tpu.dot_dimension_numbers<[1], [0], [0], [1], [0, 0, 1, 1], [], []>} : vector<1x16xf32>, vector<16x256xf32>, vector<1x256xf32> -> vector<1x256xf32>
    %26 = vector.shape_cast %25 : vector<1x256xf32> to vector<1x1x256xf32>
    %27 = vector.broadcast %26 : vector<1x1x256xf32> to vector<1x16x256xf32>
    %28 = arith.mulf %0, %27 : vector<1x16x256xf32>
    %cst_26 = arith.constant 0.000000e+00 : f32
    %29 = vector.broadcast %cst_26 : f32 to vector<1x1x256xf32>
    %c0_27 = arith.constant 0 : index
    %c0_28 = arith.constant 0 : index
    %c0_29 = arith.constant 0 : index
    %30 = vector.load %arg14[%c0_27, %c0_28, %c0_29] : memref<1x18x256xf32, #tpu.memory_space<vmem>>, vector<1x1x256xf32>
    tpu.vector_store %arg14[%c0_27, %c0_28, %c0_29], %29 {strides = array<i32>} : memref<1x18x256xf32, #tpu.memory_space<vmem>>, vector<1x1x256xf32>,
    %cst_30 = arith.constant 0.000000e+00 : f32
    %31 = vector.broadcast %cst_30 : f32 to vector<1x1x256xf32>
    %c0_31 = arith.constant 0 : index
    %c17 = arith.constant 17 : index
    %c0_32 = arith.constant 0 : index
    %32 = vector.load %arg14[%c0_31, %c17, %c0_32] : memref<1x18x256xf32, #tpu.memory_space<vmem>>, vector<1x1x256xf32>
    tpu.vector_store %arg14[%c0_31, %c17, %c0_32], %31 {strides = array<i32>} : memref<1x18x256xf32, #tpu.memory_space<vmem>>, vector<1x1x256xf32>,
    %c0_33 = arith.constant 0 : index
    %c1 = arith.constant 1 : index
    %c0_34 = arith.constant 0 : index
    %33 = vector.load %arg14[%c0_33, %c1, %c0_34] : memref<1x18x256xf32, #tpu.memory_space<vmem>>, vector<1x16x256xf32>
    tpu.vector_store %arg14[%c0_33, %c1, %c0_34], %28 {strides = array<i32>} : memref<1x18x256xf32, #tpu.memory_space<vmem>>, vector<1x16x256xf32>,
    %c0_35 = arith.constant 0 : index
    %c0_36 = arith.constant 0 : index
    %c0_37 = arith.constant 0 : index
    %34 = vector.load %arg14[%c0_35, %c0_36, %c0_37] : memref<1x18x256xf32, #tpu.memory_space<vmem>>, vector<1x16x256xf32>
    %35 = vector.shape_cast %34 : vector<1x16x256xf32> to vector<16x256xf32>
    %36 = arith.truncf %35 : vector<16x256xf32> to vector<16x256xbf16>
    %c0_38 = arith.constant 0 : index
    %c0_39 = arith.constant 0 : index
    %c0_40 = arith.constant 0 : index
    %37 = vector.load %arg10[%c0_38, %c0_39, %c0_40] : memref<3x256x64xbf16, #tpu.memory_space<vmem>>, vector<1x256x64xbf16>
    %38 = vector.shape_cast %37 : vector<1x256x64xbf16> to vector<256x64xbf16>
    %cst_41 = arith.constant dense<0.000000e+00> : vector<16x64xf32>
    %39 = tpu.matmul %36, %38, %cst_41 {dimension_numbers = #tpu.dot_dimension_numbers<[1], [0], [0], [1], [0, 0, 1, 1], [], []>} : vector<16x256xbf16>, vector<256x64xbf16>, vector<16x64xf32> -> vector<16x64xf32>
    %c0_42 = arith.constant 0 : index
    %c1_43 = arith.constant 1 : index
    %c0_44 = arith.constant 0 : index
    %40 = vector.load %arg14[%c0_42, %c1_43, %c0_44] : memref<1x18x256xf32, #tpu.memory_space<vmem>>, vector<1x16x256xf32>
    %41 = vector.shape_cast %40 : vector<1x16x256xf32> to vector<16x256xf32>
    %42 = arith.truncf %41 : vector<16x256xf32> to vector<16x256xbf16>
    %c1_45 = arith.constant 1 : index
    %c0_46 = arith.constant 0 : index
    %c0_47 = arith.constant 0 : index
    %43 = vector.load %arg10[%c1_45, %c0_46, %c0_47] : memref<3x256x64xbf16, #tpu.memory_space<vmem>>, vector<1x256x64xbf16>
    %44 = vector.shape_cast %43 : vector<1x256x64xbf16> to vector<256x64xbf16>
    %cst_48 = arith.constant dense<0.000000e+00> : vector<16x64xf32>
    %45 = tpu.matmul %42, %44, %cst_48 {dimension_numbers = #tpu.dot_dimension_numbers<[1], [0], [0], [1], [0, 0, 1, 1], [], []>} : vector<16x256xbf16>, vector<256x64xbf16>, vector<16x64xf32> -> vector<16x64xf32>
    %46 = arith.addf %39, %45 : vector<16x64xf32>
    %c0_49 = arith.constant 0 : index
    %c2 = arith.constant 2 : index
    %c0_50 = arith.constant 0 : index
    %47 = vector.load %arg14[%c0_49, %c2, %c0_50] : memref<1x18x256xf32, #tpu.memory_space<vmem>>, vector<1x16x256xf32>
    %48 = vector.shape_cast %47 : vector<1x16x256xf32> to vector<16x256xf32>
    %49 = arith.truncf %48 : vector<16x256xf32> to vector<16x256xbf16>
    %c2_51 = arith.constant 2 : index
    %c0_52 = arith.constant 0 : index
    %c0_53 = arith.constant 0 : index
    %50 = vector.load %arg10[%c2_51, %c0_52, %c0_53] : memref<3x256x64xbf16, #tpu.memory_space<vmem>>, vector<1x256x64xbf16>
    %51 = vector.shape_cast %50 : vector<1x256x64xbf16> to vector<256x64xbf16>
    %cst_54 = arith.constant dense<0.000000e+00> : vector<16x64xf32>
    %52 = tpu.matmul %49, %51, %cst_54 {dimension_numbers = #tpu.dot_dimension_numbers<[1], [0], [0], [1], [0, 0, 1, 1], [], []>} : vector<16x256xbf16>, vector<256x64xbf16>, vector<16x64xf32> -> vector<16x64xf32>
    %53 = arith.addf %46, %52 : vector<16x64xf32>
    %54 = arith.truncf %53 : vector<16x64xf32> to vector<16x64xbf16>
    %c0_55 = arith.constant 0 : index
    %c0_56 = arith.constant 0 : index
    %55 = vector.load %arg11[%c0_55, %c0_56] : memref<64x128xbf16, #tpu.memory_space<vmem>>, vector<64x128xbf16>
    %cst_57 = arith.constant dense<0.000000e+00> : vector<16x128xf32>
    %56 = tpu.matmul %54, %55, %cst_57 {dimension_numbers = #tpu.dot_dimension_numbers<[1], [0], [0], [1], [0, 0, 1, 1], [], []>} : vector<16x64xbf16>, vector<64x128xbf16>, vector<16x128xf32> -> vector<16x128xf32>
    %57 = vector.shape_cast %56 : vector<16x128xf32> to vector<1x16x128xf32>
    %c0_58 = arith.constant 0 : index
    %c0_59 = arith.constant 0 : index
    %58 = vector.load %arg12[%c0_58, %c0_59] : memref<16x128xf32, #tpu.memory_space<vmem>>, vector<16x128xf32>
    %59 = vector.shape_cast %58 : vector<16x128xf32> to vector<1x16x128xf32>
    %60 = arith.addf %57, %59 : vector<1x16x128xf32>
    %cst_60 = arith.constant 0.000000e+00 : f32
    %61 = vector.broadcast %cst_60 : f32 to vector<1x16x128xf32>
    %62 = arith.maximumf %60, %61 : vector<1x16x128xf32>
    %c0_61 = arith.constant 0 : index
    %c0_62 = arith.constant 0 : index
    %c0_63 = arith.constant 0 : index
    %63 = vector.load %arg13[%c0_61, %c0_62, %c0_63] : memref<1x16x128xf32, #tpu.memory_space<vmem>>, vector<1x16x128xf32>
    tpu.vector_store %arg13[%c0_61, %c0_62, %c0_63], %62 {strides = array<i32>} : memref<1x16x128xf32, #tpu.memory_space<vmem>>, vector<1x16x128xf32>,
    return
  }
  func.func @transform_0(%arg0: i32) -> (i32, i32, i32) {
    %c0_i32 = arith.constant 0 : i32
    %c0_i32_0 = arith.constant 0 : i32
    %c0_i32_1 = arith.constant 0 : i32
    return %arg0, %c0_i32, %c0_i32_0 : i32, i32, i32
  }
  func.func @transform_1(%arg0: i32) -> (i32, i32, i32) {
    %c0_i32 = arith.constant 0 : i32
    %c0_i32_0 = arith.constant 0 : i32
    %c0_i32_1 = arith.constant 0 : i32
    return %arg0, %c0_i32, %c0_i32_0 : i32, i32, i32
  }
  func.func @transform_2(%arg0: i32) -> (i32, i32, i32) {
    %c0_i32 = arith.constant 0 : i32
    %c0_i32_0 = arith.constant 0 : i32
    %c0_i32_1 = arith.constant 0 : i32
    return %arg0, %c0_i32, %c0_i32_0 : i32, i32, i32
  }
  func.func @transform_3(%arg0: i32) -> (i32, i32) {
    %c0_i32 = arith.constant 0 : i32
    %c0_i32_0 = arith.constant 0 : i32
    %c0_i32_1 = arith.constant 0 : i32
    return %c0_i32, %c0_i32_0 : i32, i32
  }
  func.func @transform_4(%arg0: i32) -> (i32, i32) {
    %c0_i32 = arith.constant 0 : i32
    %c0_i32_0 = arith.constant 0 : i32
    %c0_i32_1 = arith.constant 0 : i32
    return %c0_i32, %c0_i32_0 : i32, i32
  }
  func.func @transform_5(%arg0: i32) -> (i32, i32) {
    %c0_i32 = arith.constant 0 : i32
    %c0_i32_0 = arith.constant 0 : i32
    %c0_i32_1 = arith.constant 0 : i32
    return %c0_i32, %c0_i32_0 : i32, i32
  }
  func.func @transform_6(%arg0: i32) -> (i32, i32) {
    %c0_i32 = arith.constant 0 : i32
    %c0_i32_0 = arith.constant 0 : i32
    %c0_i32_1 = arith.constant 0 : i32
    return %c0_i32, %c0_i32_0 : i32, i32
  }
  func.func @transform_7(%arg0: i32) -> (i32, i32) {
    %c0_i32 = arith.constant 0 : i32
    %c0_i32_0 = arith.constant 0 : i32
    %c0_i32_1 = arith.constant 0 : i32
    return %c0_i32, %c0_i32_0 : i32, i32
  }
  func.func @transform_8(%arg0: i32) -> (i32, i32) {
    %c0_i32 = arith.constant 0 : i32
    %c0_i32_0 = arith.constant 0 : i32
    %c0_i32_1 = arith.constant 0 : i32
    return %c0_i32, %c0_i32_0 : i32, i32
  }
  func.func @transform_9(%arg0: i32) -> (i32, i32, i32) {
    %c0_i32 = arith.constant 0 : i32
    %c0_i32_0 = arith.constant 0 : i32
    %c0_i32_1 = arith.constant 0 : i32
    %c0_i32_2 = arith.constant 0 : i32
    return %c0_i32, %c0_i32_0, %c0_i32_1 : i32, i32, i32
  }
  func.func @transform_10(%arg0: i32) -> (i32, i32) {
    %c0_i32 = arith.constant 0 : i32
    %c0_i32_0 = arith.constant 0 : i32
    %c0_i32_1 = arith.constant 0 : i32
    return %c0_i32, %c0_i32_0 : i32, i32
  }
  func.func @transform_11(%arg0: i32) -> (i32, i32) {
    %c0_i32 = arith.constant 0 : i32
    %c0_i32_0 = arith.constant 0 : i32
    %c0_i32_1 = arith.constant 0 : i32
    return %c0_i32, %c0_i32_0 : i32, i32
  }
  func.func @transform_12(%arg0: i32) -> (i32, i32, i32) {
    %c0_i32 = arith.constant 0 : i32
    %c0_i32_0 = arith.constant 0 : i32
    %c0_i32_1 = arith.constant 0 : i32
    return %arg0, %c0_i32, %c0_i32_0 : i32, i32, i32
  }
}

</mosaic_0001>

<llo_original>
// kernel: tpu_custom_call.1
$region0: #{tpu_custom_call.1}
  #allocation0 [shape = 'u32[]', space=smem, size = 0x4, offset = 0x4, fixed_abs, tag = 'smem constant byte address 0x4 - core index']
  #allocation1 [shape = 'u32[144,128]{1,0:T(1,128)}', space=vmem, size = 0x12000, scoped, tag = 'internal scratch']
  #allocation2 [shape = 'f32[1,18,256]{2,1,0:T(8,128)}', space=vmem, size = 0x6000, scoped, tag = 'scratch operand']
  %s0 = inlined_call_operand.vmem [shape: f32[4,16,256], index: 0, kind: input, shape index: {}]
  %s1 = inlined_call_operand.vmem [shape: f32[4,1,16], index: 1, kind: input, shape index: {}]
  %s2 = inlined_call_operand.vmem [shape: f32[4,1,16], index: 2, kind: input, shape index: {}]
  %s3 = inlined_call_operand.vmem [shape: f32[16,16], index: 3, kind: input, shape index: {}]
  %s4 = inlined_call_operand.vmem [shape: f32[1,16], index: 4, kind: input, shape index: {}]
  %s5 = inlined_call_operand.vmem [shape: f32[16,16], index: 5, kind: input, shape index: {}]
  %s6 = inlined_call_operand.vmem [shape: f32[1,16], index: 6, kind: input, shape index: {}]
  %s7 = inlined_call_operand.vmem [shape: f32[256,16], index: 7, kind: input, shape index: {}]
  %s8 = inlined_call_operand.vmem [shape: f32[16,256], index: 8, kind: input, shape index: {}]
  %s9 = inlined_call_operand.vmem [shape: bf16[3,256,64], index: 9, kind: input, shape index: {}]
  %s10 = inlined_call_operand.vmem [shape: bf16[64,128], index: 10, kind: input, shape index: {}]
  %s11 = inlined_call_operand.vmem [shape: f32[16,128], index: 11, kind: input, shape index: {}]
  %s12 = inlined_call_operand.hbm [shape: f32[4,16,128], index: 12, kind: output, shape index: {}]
  %s13 = sld [smem:[#allocation0]]
  $region81: #{tpu_custom_call.1} parent=0
    _
  %s15 = ssub.s32 1, %s13
  %s16 = scalar_select 0, %s15, %s13
  $region1: #{tpu_custom_call.1} parent=0
    #allocation3 [shape = 'u8[16384]{0}', space=vmem, size = 0x4000, scoped, tag = 'output window, operand 0']
    #allocation4 [shape = 's32[2]{0}', space=sflag, size = 0x8, scoped, tag = 'scoped memory for tpu_custom_call.1']
    %17 = vsyncpa [#allocation4], 0
    %s18 = scalar_lea.sflag [#allocation4], 1
    %19 = vsyncpa %s18, 0
    loop: start=0, step=1, limit=6
    $region2: #{tpu_custom_call.1} parent=1 // loop_pre_header
      _
    $region3: #{tpu_custom_call.1} parent=1 // loop_header
      %s21 = sphi 0, %s25
      %p22 = scmp.ge.s32.totalorder %s21, 6
      %s31 = sphi 0, %s33
      %s34 = sphi 0, %s31
      %s35 = sphi 0, %s34
      %s51 = sphi 0, %s35
      %s57 = sphi 0, %s59
      %s60 = sphi 0, %s57
      %s61 = sphi 0, %s60
      %s77 = sphi 0, %s61
      %s83 = sphi 0, %s85
      %s86 = sphi 0, %s83
      %s87 = sphi 0, %s86
      %s103 = sphi 0, %s87
      %s107 = sphi 0, %s107
      %s109 = sphi 0, %s107
      %s110 = sphi 0, %s109
      %s124 = sphi 0, %s110
      %s128 = sphi 0, %s128
      %s130 = sphi 0, %s128
      %s131 = sphi 0, %s130
      %s145 = sphi 0, %s131
      %s149 = sphi 0, %s149
      %s151 = sphi 0, %s149
      %s152 = sphi 0, %s151
      %s166 = sphi 0, %s152
      %s170 = sphi 0, %s170
      %s172 = sphi 0, %s170
      %s173 = sphi 0, %s172
      %s187 = sphi 0, %s173
      %s191 = sphi 0, %s191
      %s193 = sphi 0, %s191
      %s194 = sphi 0, %s193
      %s208 = sphi 0, %s194
      %s212 = sphi 0, %s212
      %s214 = sphi 0, %s212
      %s215 = sphi 0, %s214
      %s229 = sphi 0, %s215
      %s233 = sphi 0, %s233
      %s235 = sphi 0, %s233
      %s236 = sphi 0, %s235
      %s250 = sphi 0, %s236
      %s254 = sphi 0, %s254
      %s256 = sphi 0, %s254
      %s257 = sphi 0, %s256
      %s271 = sphi 0, %s257
      %s275 = sphi 0, %s275
      %s277 = sphi 0, %s275
      %s278 = sphi 0, %s277
      %s292 = sphi 0, %s278
      %s298 = sphi 0, %s300
      %s301 = sphi 0, %s298
      %s302 = sphi 0, %s301
      %s318 = sphi 0, %s302
    $region4: #{tpu_custom_call.1} parent=1 // loop_header_branch
      %24 = sbr.rel (%p22) target = $region8
    $region5: #{tpu_custom_call.1} parent=1 // loop_body
      %s26 = ssub.s32 %s21, 1
      %s27 = ssub.s32 %s21, 2
      %s28 = sadd.s32 %s21, 1
      %s29 = ssub.s32 %s21, %s28
      %p30 = scmp.eq.s32.totalorder %s29, 0
      %s32 = sadd.s32 %s31, 1
      %s33 = scalar_select %p30, %s31, %s32
      %p36 = pneg %p30
      %p37 = scmp.eq.s32.totalorder %s21, 3
      %p38 = por %p36, %p37
      %p39 = scmp.ne.s32.totalorder %s31, %s34
      %p40 = scmp.eq.s32.totalorder %s21, 0
      %p41 = por %p39, %p40
      %p42 = scmp.ne.s32.totalorder %s31, %s34
      %p43 = scmp.eq.s32.totalorder %s26, 3
      %p44 = por %p42, %p43
      %p45 = scmp.ne.s32.totalorder %s34, %s35
      %p46 = scmp.eq.s32.totalorder %s26, 0
      %p47 = por %p45, %p46
      %p48 = scmp.ne.s32.totalorder %s34, %s35
      %p49 = scmp.eq.s32.totalorder %s27, 3
      %p50 = por %p48, %p49
      %p52 = scmp.ne.s32.totalorder %s35, %s51
      %p53 = scmp.eq.s32.totalorder %s27, 0
      %p54 = por %p52, %p53
      %s55 = ssub.s32 %s21, %s28
      %p56 = scmp.eq.s32.totalorder %s55, 0
      %s58 = sadd.s32 %s57, 1
      %s59 = scalar_select %p56, %s57, %s58
      %p62 = pneg %p56
      %p63 = scmp.eq.s32.totalorder %s21, 3
      %p64 = por %p62, %p63
      %p65 = scmp.ne.s32.totalorder %s57, %s60
      %p66 = scmp.eq.s32.totalorder %s21, 0
      %p67 = por %p65, %p66
      %p68 = scmp.ne.s32.totalorder %s57, %s60
      %p69 = scmp.eq.s32.totalorder %s26, 3
      %p70 = por %p68, %p69
      %p71 = scmp.ne.s32.totalorder %s60, %s61
      %p72 = scmp.eq.s32.totalorder %s26, 0
      %p73 = por %p71, %p72
      %p74 = scmp.ne.s32.totalorder %s60, %s61
      %p75 = scmp.eq.s32.totalorder %s27, 3
      %p76 = por %p74, %p75
      %p78 = scmp.ne.s32.totalorder %s61, %s77
      %p79 = scmp.eq.s32.totalorder %s27, 0
      %p80 = por %p78, %p79
      %s81 = ssub.s32 %s21, %s28
      %p82 = scmp.eq.s32.totalorder %s81, 0
      %s84 = sadd.s32 %s83, 1
      %s85 = scalar_select %p82, %s83, %s84
      %p88 = pneg %p82
      %p89 = scmp.eq.s32.totalorder %s21, 3
      %p90 = por %p88, %p89
      %p91 = scmp.ne.s32.totalorder %s83, %s86
      %p92 = scmp.eq.s32.totalorder %s21, 0
      %p93 = por %p91, %p92
      %p94 = scmp.ne.s32.totalorder %s83, %s86
      %p95 = scmp.eq.s32.totalorder %s26, 3
      %p96 = por %p94, %p95
      %p97 = scmp.ne.s32.totalorder %s86, %s87
      %p98 = scmp.eq.s32.totalorder %s26, 0
      %p99 = por %p97, %p98
      %p100 = scmp.ne.s32.totalorder %s86, %s87
      %p101 = scmp.eq.s32.totalorder %s27, 3
      %p102 = por %p100, %p101
      %p104 = scmp.ne.s32.totalorder %s87, %s103
      %p105 = scmp.eq.s32.totalorder %s27, 0
      %p106 = por %p104, %p105
      %s108 = sadd.s32 %s107, 1
      %p111 = scmp.eq.s32.totalorder %s21, 3
      %p112 = scmp.ne.s32.totalorder %s107, %s109
      %p113 = scmp.eq.s32.totalorder %s21, 0
      %p114 = por %p112, %p113
      %p115 = scmp.ne.s32.totalorder %s107, %s109
      %p116 = scmp.eq.s32.totalorder %s26, 3
      %p117 = por %p115, %p116
      %p118 = scmp.ne.s32.totalorder %s109, %s110
      %p119 = scmp.eq.s32.totalorder %s26, 0
      %p120 = por %p118, %p119
      %p121 = scmp.ne.s32.totalorder %s109, %s110
      %p122 = scmp.eq.s32.totalorder %s27, 3
      %p123 = por %p121, %p122
      %p125 = scmp.ne.s32.totalorder %s110, %s124
      %p126 = scmp.eq.s32.totalorder %s27, 0
      %p127 = por %p125, %p126
      %s129 = sadd.s32 %s128, 1
      %p132 = scmp.eq.s32.totalorder %s21, 3
      %p133 = scmp.ne.s32.totalorder %s128, %s130
      %p134 = scmp.eq.s32.totalorder %s21, 0
      %p135 = por %p133, %p134
      %p136 = scmp.ne.s32.totalorder %s128, %s130
      %p137 = scmp.eq.s32.totalorder %s26, 3
      %p138 = por %p136, %p137
      %p139 = scmp.ne.s32.totalorder %s130, %s131
      %p140 = scmp.eq.s32.totalorder %s26, 0
      %p141 = por %p139, %p140
      %p142 = scmp.ne.s32.totalorder %s130, %s131
      %p143 = scmp.eq.s32.totalorder %s27, 3
      %p144 = por %p142, %p143
      %p146 = scmp.ne.s32.totalorder %s131, %s145
      %p147 = scmp.eq.s32.totalorder %s27, 0
      %p148 = por %p146, %p147
      %s150 = sadd.s32 %s149, 1
      %p153 = scmp.eq.s32.totalorder %s21, 3
      %p154 = scmp.ne.s32.totalorder %s149, %s151
      %p155 = scmp.eq.s32.totalorder %s21, 0
      %p156 = por %p154, %p155
      %p157 = scmp.ne.s32.totalorder %s149, %s151
      %p158 = scmp.eq.s32.totalorder %s26, 3
      %p159 = por %p157, %p158
      %p160 = scmp.ne.s32.totalorder %s151, %s152
      %p161 = scmp.eq.s32.totalorder %s26, 0
      %p162 = por %p160, %p161
      %p163 = scmp.ne.s32.totalorder %s151, %s152
      %p164 = scmp.eq.s32.totalorder %s27, 3
      %p165 = por %p163, %p164
      %p167 = scmp.ne.s32.totalorder %s152, %s166
      %p168 = scmp.eq.s32.totalorder %s27, 0
      %p169 = por %p167, %p168
      %s171 = sadd.s32 %s170, 1
      %p174 = scmp.eq.s32.totalorder %s21, 3
      %p175 = scmp.ne.s32.totalorder %s170, %s172
      %p176 = scmp.eq.s32.totalorder %s21, 0
      %p177 = por %p175, %p176
      %p178 = scmp.ne.s32.totalorder %s170, %s172
      %p179 = scmp.eq.s32.totalorder %s26, 3
      %p180 = por %p178, %p179
      %p181 = scmp.ne.s32.totalorder %s172, %s173
      %p182 = scmp.eq.s32.totalorder %s26, 0
      %p183 = por %p181, %p182
      %p184 = scmp.ne.s32.totalorder %s172, %s173
      %p185 = scmp.eq.s32.totalorder %s27, 3
      %p186 = por %p184, %p185
      %p188 = scmp.ne.s32.totalorder %s173, %s187
      %p189 = scmp.eq.s32.totalorder %s27, 0
      %p190 = por %p188, %p189
      %s192 = sadd.s32 %s191, 1
      %p195 = scmp.eq.s32.totalorder %s21, 3
      %p196 = scmp.ne.s32.totalorder %s191, %s193
      %p197 = scmp.eq.s32.totalorder %s21, 0
      %p198 = por %p196, %p197
      %p199 = scmp.ne.s32.totalorder %s191, %s193
      %p200 = scmp.eq.s32.totalorder %s26, 3
      %p201 = por %p199, %p200
      %p202 = scmp.ne.s32.totalorder %s193, %s194
      %p203 = scmp.eq.s32.totalorder %s26, 0
      %p204 = por %p202, %p203
      %p205 = scmp.ne.s32.totalorder %s193, %s194
      %p206 = scmp.eq.s32.totalorder %s27, 3
      %p207 = por %p205, %p206
      %p209 = scmp.ne.s32.totalorder %s194, %s208
      %p210 = scmp.eq.s32.totalorder %s27, 0
      %p211 = por %p209, %p210
      %s213 = sadd.s32 %s212, 1
      %p216 = scmp.eq.s32.totalorder %s21, 3
      %p217 = scmp.ne.s32.totalorder %s212, %s214
      %p218 = scmp.eq.s32.totalorder %s21, 0
      %p219 = por %p217, %p218
      %p220 = scmp.ne.s32.totalorder %s212, %s214
      %p221 = scmp.eq.s32.totalorder %s26, 3
      %p222 = por %p220, %p221
      %p223 = scmp.ne.s32.totalorder %s214, %s215
      %p224 = scmp.eq.s32.totalorder %s26, 0
      %p225 = por %p223, %p224
      %p226 = scmp.ne.s32.totalorder %s214, %s215
      %p227 = scmp.eq.s32.totalorder %s27, 3
      %p228 = por %p226, %p227
      %p230 = scmp.ne.s32.totalorder %s215, %s229
      %p231 = scmp.eq.s32.totalorder %s27, 0
      %p232 = por %p230, %p231
      %s234 = sadd.s32 %s233, 1
      %p237 = scmp.eq.s32.totalorder %s21, 3
      %p238 = scmp.ne.s32.totalorder %s233, %s235
      %p239 = scmp.eq.s32.totalorder %s21, 0
      %p240 = por %p238, %p239
      %p241 = scmp.ne.s32.totalorder %s233, %s235
      %p242 = scmp.eq.s32.totalorder %s26, 3
      %p243 = por %p241, %p242
      %p244 = scmp.ne.s32.totalorder %s235, %s236
      %p245 = scmp.eq.s32.totalorder %s26, 0
      %p246 = por %p244, %p245
      %p247 = scmp.ne.s32.totalorder %s235, %s236
      %p248 = scmp.eq.s32.totalorder %s27, 3
      %p249 = por %p247, %p248
      %p251 = scmp.ne.s32.totalorder %s236, %s250
      %p252 = scmp.eq.s32.totalorder %s27, 0
      %p253 = por %p251, %p252
      %s255 = sadd.s32 %s254, 1
      %p258 = scmp.eq.s32.totalorder %s21, 3
      %p259 = scmp.ne.s32.totalorder %s254, %s256
      %p260 = scmp.eq.s32.totalorder %s21, 0
      %p261 = por %p259, %p260
      %p262 = scmp.ne.s32.totalorder %s254, %s256
      %p263 = scmp.eq.s32.totalorder %s26, 3
      %p264 = por %p262, %p263
      %p265 = scmp.ne.s32.totalorder %s256, %s257
      %p266 = scmp.eq.s32.totalorder %s26, 0
      %p267 = por %p265, %p266
      %p268 = scmp.ne.s32.totalorder %s256, %s257
      %p269 = scmp.eq.s32.totalorder %s27, 3
      %p270 = por %p268, %p269
      %p272 = scmp.ne.s32.totalorder %s257, %s271
      %p273 = scmp.eq.s32.totalorder %s27, 0
      %p274 = por %p272, %p273
      %s276 = sadd.s32 %s275, 1
      %p279 = scmp.eq.s32.totalorder %s21, 3
      %p280 = scmp.ne.s32.totalorder %s275, %s277
      %p281 = scmp.eq.s32.totalorder %s21, 0
      %p282 = por %p280, %p281
      %p283 = scmp.ne.s32.totalorder %s275, %s277
      %p284 = scmp.eq.s32.totalorder %s26, 3
      %p285 = por %p283, %p284
      %p286 = scmp.ne.s32.totalorder %s277, %s278
      %p287 = scmp.eq.s32.totalorder %s26, 0
      %p288 = por %p286, %p287
      %p289 = scmp.ne.s32.totalorder %s277, %s278
      %p290 = scmp.eq.s32.totalorder %s27, 3
      %p291 = por %p289, %p290
      %p293 = scmp.ne.s32.totalorder %s278, %s292
      %p294 = scmp.eq.s32.totalorder %s27, 0
      %p295 = por %p293, %p294
      %s296 = ssub.s32 %s21, %s28
      %p297 = scmp.eq.s32.totalorder %s296, 0
      %s299 = sadd.s32 %s298, 1
      %s300 = scalar_select %p297, %s298, %s299
      %p303 = pneg %p297
      %p304 = scmp.eq.s32.totalorder %s21, 3
      %p305 = por %p303, %p304
      %p306 = scmp.ne.s32.totalorder %s298, %s301
      %p307 = scmp.eq.s32.totalorder %s21, 0
      %p308 = por %p306, %p307
      %p309 = scmp.ne.s32.totalorder %s298, %s301
      %p310 = scmp.eq.s32.totalorder %s26, 3
      %p311 = por %p309, %p310
      %p312 = scmp.ne.s32.totalorder %s301, %s302
      %p313 = scmp.eq.s32.totalorder %s26, 0
      %p314 = por %p312, %p313
      %p315 = scmp.ne.s32.totalorder %s301, %s302
      %p316 = scmp.eq.s32.totalorder %s27, 3
      %p317 = por %p315, %p316
      %p319 = scmp.ne.s32.totalorder %s302, %s318
      %p320 = scmp.eq.s32.totalorder %s27, 0
      %p321 = por %p319, %p320
      %p322 = scmp.le.s32.totalorder 1, %s21
      %p323 = scmp.lt.s32.totalorder %s21, 5
      %p324 = pnand %p322, %p323
      %p325 = pneg %p324
      // Predicated region
      $region9: #{tpu_custom_call.1} parent=5 // pred_check
        _
      $region10: #{tpu_custom_call.1} parent=5 // pred_check_branch
        %327 = sbr.rel (%p324) target = $region12
      $region11: #{tpu_custom_call.1} parent=5 // pred_region
        %s328 = ssub.s32 %s21, 1
        // Predicated region
        $region13: #{tpu_custom_call.1} parent=11 // pred_check
          %p329 = pneg %p120
        $region14: #{tpu_custom_call.1} parent=11 // pred_check_branch
          %331 = sbr.rel (%p329) target = $region16
        $region15: #{tpu_custom_call.1} parent=11 // pred_region
          _
        $region16: #{tpu_custom_call.1} parent=11 // pred_fallthru
          _
        // Predicated region
        $region17: #{tpu_custom_call.1} parent=11 // pred_check
          %p332 = pneg %p141
        $region18: #{tpu_custom_call.1} parent=11 // pred_check_branch
          %334 = sbr.rel (%p332) target = $region20
        $region19: #{tpu_custom_call.1} parent=11 // pred_region
          _
        $region20: #{tpu_custom_call.1} parent=11 // pred_fallthru
          _
        // Predicated region
        $region21: #{tpu_custom_call.1} parent=11 // pred_check
          %p335 = pneg %p162
        $region22: #{tpu_custom_call.1} parent=11 // pred_check_branch
          %337 = sbr.rel (%p335) target = $region24
        $region23: #{tpu_custom_call.1} parent=11 // pred_region
          _
        $region24: #{tpu_custom_call.1} parent=11 // pred_fallthru
          _
        // Predicated region
        $region25: #{tpu_custom_call.1} parent=11 // pred_check
          %p338 = pneg %p183
        $region26: #{tpu_custom_call.1} parent=11 // pred_check_branch
          %340 = sbr.rel (%p338) target = $region28
        $region27: #{tpu_custom_call.1} parent=11 // pred_region
          _
        $region28: #{tpu_custom_call.1} parent=11 // pred_fallthru
          _
        // Predicated region
        $region29: #{tpu_custom_call.1} parent=11 // pred_check
          %p341 = pneg %p204
        $region30: #{tpu_custom_call.1} parent=11 // pred_check_branch
          %343 = sbr.rel (%p341) target = $region32
        $region31: #{tpu_custom_call.1} parent=11 // pred_region
          _
        $region32: #{tpu_custom_call.1} parent=11 // pred_fallthru
          _
        // Predicated region
        $region33: #{tpu_custom_call.1} parent=11 // pred_check
          %p344 = pneg %p225
        $region34: #{tpu_custom_call.1} parent=11 // pred_check_branch
          %346 = sbr.rel (%p344) target = $region36
        $region35: #{tpu_custom_call.1} parent=11 // pred_region
          _
        $region36: #{tpu_custom_call.1} parent=11 // pred_fallthru
          _
        // Predicated region
        $region37: #{tpu_custom_call.1} parent=11 // pred_check
          %p347 = pneg %p246
        $region38: #{tpu_custom_call.1} parent=11 // pred_check_branch
          %349 = sbr.rel (%p347) target = $region40
        $region39: #{tpu_custom_call.1} parent=11 // pred_region
          _
        $region40: #{tpu_custom_call.1} parent=11 // pred_fallthru
          _
        // Predicated region
        $region41: #{tpu_custom_call.1} parent=11 // pred_check
          %p350 = pneg %p267
        $region42: #{tpu_custom_call.1} parent=11 // pred_check_branch
          %352 = sbr.rel (%p350) target = $region44
        $region43: #{tpu_custom_call.1} parent=11 // pred_region
          _
        $region44: #{tpu_custom_call.1} parent=11 // pred_fallthru
          _
        // Predicated region
        $region45: #{tpu_custom_call.1} parent=11 // pred_check
          %p353 = pneg %p288
        $region46: #{tpu_custom_call.1} parent=11 // pred_check_branch
          %355 = sbr.rel (%p353) target = $region48
        $region47: #{tpu_custom_call.1} parent=11 // pred_region
          _
        $region48: #{tpu_custom_call.1} parent=11 // pred_fallthru
          _
      $region12: #{tpu_custom_call.1} parent=5 // pred_fallthru
        _
      %p356 = scmp.lt.s32.totalorder %s21, 4
      // Predicated region
      $region49: #{tpu_custom_call.1} parent=5 // pred_check
        %p357 = pneg %p356
      $region50: #{tpu_custom_call.1} parent=5 // pred_check_branch
        %359 = sbr.rel (%p357) target = $region52
      $region51: #{tpu_custom_call.1} parent=5 // pred_region
        // Predicated region
        $region53: #{tpu_custom_call.1} parent=51 // pred_check
          %p360 = pneg %p41
        $region54: #{tpu_custom_call.1} parent=51 // pred_check_branch
          %362 = sbr.rel (%p360) target = $region56
        $region55: #{tpu_custom_call.1} parent=51 // pred_region
          %p363 = scmp.lt.s32.totalorder %s21, 3
          %s364 = scalar_select %p363, %s21, 3
          %s365 = smul.addr %s364, 4
          %s366 = smul.addr %s365, 8
          %s367 = scalar_lea.vmem %s0, %s366
        $region56: #{tpu_custom_call.1} parent=51 // pred_fallthru
          _
        // Predicated region
        $region57: #{tpu_custom_call.1} parent=51 // pred_check
          %p368 = pneg %p67
        $region58: #{tpu_custom_call.1} parent=51 // pred_check_branch
          %370 = sbr.rel (%p368) target = $region60
        $region59: #{tpu_custom_call.1} parent=51 // pred_region
          %p371 = scmp.lt.s32.totalorder %s21, 3
          %s372 = scalar_select %p371, %s21, 3
          %s373 = scalar_lea.vmem %s1, %s372
        $region60: #{tpu_custom_call.1} parent=51 // pred_fallthru
          _
        // Predicated region
        $region61: #{tpu_custom_call.1} parent=51 // pred_check
          %p374 = pneg %p93
        $region62: #{tpu_custom_call.1} parent=51 // pred_check_branch
          %376 = sbr.rel (%p374) target = $region64
        $region63: #{tpu_custom_call.1} parent=51 // pred_region
          %p377 = scmp.lt.s32.totalorder %s21, 3
          %s378 = scalar_select %p377, %s21, 3
          %s379 = scalar_lea.vmem %s2, %s378
        $region64: #{tpu_custom_call.1} parent=51 // pred_fallthru
          _
      $region52: #{tpu_custom_call.1} parent=5 // pred_fallthru
        _
      %p380 = scmp.le.s32.totalorder 1, %s21
      %p381 = scmp.lt.s32.totalorder %s21, 5
      %p382 = pnand %p380, %p381
      %p383 = pneg %p382
      // Predicated region
      $region65: #{tpu_custom_call.1} parent=5 // pred_check
        _
      $region66: #{tpu_custom_call.1} parent=5 // pred_check_branch
        %385 = sbr.rel (%p382) target = $region68
      $region67: #{tpu_custom_call.1} parent=5 // pred_region
        %s386 = ssub.s32 %s21, 1
        %p387 = scmp.lt.s32.totalorder %s26, 3
        %s388 = scalar_select %p387, %s26, 3
        %s389 = smul.addr %s388, 4
        %s390 = smul.addr %s389, 8
        %s391 = scalar_lea.vmem %s0, %s390
        %p392 = pneg %p47
        %p393 = pneg %p44
        %p394 = scmp.lt.s32.totalorder %s26, 3
        %s395 = scalar_select %p394, %s26, 3
        %s396 = scalar_lea.vmem %s1, %s395
        %p397 = pneg %p73
        %p398 = pneg %p70
        %p399 = scmp.lt.s32.totalorder %s26, 3
        %s400 = scalar_select %p399, %s26, 3
        %s401 = scalar_lea.vmem %s2, %s400
        %p402 = pneg %p99
        %p403 = pneg %p96
        %p404 = pneg %p120
        %p405 = pneg %p117
        %p406 = pneg %p141
        %p407 = pneg %p138
        %p408 = pneg %p162
        %p409 = pneg %p159
        %p410 = pneg %p183
        %p411 = pneg %p180
        %p412 = pneg %p204
        %p413 = pneg %p201
        %p414 = pneg %p225
        %p415 = pneg %p222
        %p416 = pneg %p246
        %p417 = pneg %p243
        %p418 = pneg %p267
        %p419 = pneg %p264
        %p420 = pneg %p288
        %p421 = pneg %p285
        %p422 = pneg %p314
        %p423 = pneg %p311
        %s424 = sand.u32 %s301, 1
        %s425 = scalar_lea.sflag [#allocation4], %s424
        %s426 = sand.u32 %s301, 1
        %s427 = smul.addr %s426, 16
        %s428 = scalar_lea.vmem [#allocation3], %s427
        %p429 = scmp.lt.s32.totalorder %s26, 3
        %s430 = scalar_select %p429, %s26, 3
        %s431 = smul.addr %s430, 4
        %s432 = smul.addr %s431, 8
        %s433 = scalar_lea.vmem %s0, %s432
        %p434 = scmp.lt.s32.totalorder %s26, 3
        %s435 = scalar_select %p434, %s26, 3
        %s436 = scalar_lea.vmem %s1, %s435
        %p437 = scmp.lt.s32.totalorder %s26, 3
        %s438 = scalar_select %p437, %s26, 3
        %s439 = scalar_lea.vmem %s2, %s438
        %v441 = vld [vmem:[%s433] sm:$0xff]
        %v442 = vld [vmem:[%s433 + $0x8] sm:$0xff]
        %v443 = vld [vmem:[%s433 + $0x10] sm:$0xff]
        %v444 = vld [vmem:[%s433 + $0x18] sm:$0xff]
        %v445 = vld [vmem:[%s7] sm:$0xff]
        %v446 = vld [vmem:[%s7 + $0x8] sm:$0xff]
        %v447 = vld [vmem:[%s7 + $0x10] sm:$0xff]
        %v448 = vld [vmem:[%s7 + $0x18] sm:$0xff]
        %v449 = vld [vmem:[%s7 + $0x20] sm:$0xff]
        %v450 = vld [vmem:[%s7 + $0x28] sm:$0xff]
        %v451 = vld [vmem:[%s7 + $0x30] sm:$0xff]
        %v452 = vld [vmem:[%s7 + $0x38] sm:$0xff]
        %v453 = vld [vmem:[%s7 + $0x40] sm:$0xff]
        %v454 = vld [vmem:[%s7 + $0x48] sm:$0xff]
        %v455 = vld [vmem:[%s7 + $0x50] sm:$0xff]
        %v456 = vld [vmem:[%s7 + $0x58] sm:$0xff]
        %v457 = vld [vmem:[%s7 + $0x60] sm:$0xff]
        %v458 = vld [vmem:[%s7 + $0x68] sm:$0xff]
        %v459 = vld [vmem:[%s7 + $0x70] sm:$0xff]
        %v460 = vld [vmem:[%s7 + $0x78] sm:$0xff]
        %v461 = vld [vmem:[%s7 + $0x80] sm:$0xff]
        %v462 = vld [vmem:[%s7 + $0x88] sm:$0xff]
        %v463 = vld [vmem:[%s7 + $0x90] sm:$0xff]
        %v464 = vld [vmem:[%s7 + $0x98] sm:$0xff]
        %v465 = vld [vmem:[%s7 + $0xa0] sm:$0xff]
        %v466 = vld [vmem:[%s7 + $0xa8] sm:$0xff]
        %v467 = vld [vmem:[%s7 + $0xb0] sm:$0xff]
        %v468 = vld [vmem:[%s7 + $0xb8] sm:$0xff]
        %v469 = vld [vmem:[%s7 + $0xc0] sm:$0xff]
        %v470 = vld [vmem:[%s7 + $0xc8] sm:$0xff]
        %v471 = vld [vmem:[%s7 + $0xd0] sm:$0xff]
        %v472 = vld [vmem:[%s7 + $0xd8] sm:$0xff]
        %v473 = vld [vmem:[%s7 + $0xe0] sm:$0xff]
        %v474 = vld [vmem:[%s7 + $0xe8] sm:$0xff]
        %v475 = vld [vmem:[%s7 + $0xf0] sm:$0xff]
        %v476 = vld [vmem:[%s7 + $0xf8] sm:$0xff]
        %477 = vmatprep.subr.mxu0 0.0
        %478 = vmatpush1.msra.mxu0 %v445
        %479 = vmatprep.subr.mxu0 0.0
        %480 = vmatpush1.msra.mxu0 %v446
        %481 = vmatprep.subr.mxu0 0.0
        %482 = vmatpush1.msra.mxu0 %v447
        %483 = vmatprep.subr.mxu0 0.0
        %484 = vmatpush1.msra.mxu0 %v448
        %485 = vmatprep.subr.mxu0 0.0
        %486 = vmatpush1.msra.mxu0 %v449
        %487 = vmatprep.subr.mxu0 0.0
        %488 = vmatpush1.msra.mxu0 %v450
        %489 = vmatprep.subr.mxu0 0.0
        %490 = vmatpush1.msra.mxu0 %v451
        %491 = vmatprep.subr.mxu0 0.0
        %492 = vmatpush1.msra.mxu0 %v452
        %493 = vmatprep.subr.mxu0 0.0
        %494 = vmatpush1.msra.mxu0 %v453
        %495 = vmatprep.subr.mxu0 0.0
        %496 = vmatpush1.msra.mxu0 %v454
        %497 = vmatprep.subr.mxu0 0.0
        %498 = vmatpush1.msra.mxu0 %v455
        %499 = vmatprep.subr.mxu0 0.0
        %500 = vmatpush1.msra.mxu0 %v456
        %501 = vmatprep.subr.mxu0 0.0
        %502 = vmatpush1.msra.mxu0 %v457
        %503 = vmatprep.subr.mxu0 0.0
        %504 = vmatpush1.msra.mxu0 %v458
        %505 = vmatprep.subr.mxu0 0.0
        %506 = vmatpush1.msra.mxu0 %v459
        %507 = vmatprep.subr.mxu0 0.0
        %508 = vmatpush1.msra.mxu0 %v460
        %509 = vmatprep.subr.mxu0 0.0
        %510 = vmatpush1.msra.mxu0 %v461
        %511 = vmatprep.subr.mxu0 0.0
        %512 = vmatpush1.msra.mxu0 %v462
        %513 = vmatprep.subr.mxu0 0.0
        %514 = vmatpush1.msra.mxu0 %v463
        %515 = vmatprep.subr.mxu0 0.0
        %516 = vmatpush1.msra.mxu0 %v464
        %517 = vmatprep.subr.mxu0 0.0
        %518 = vmatpush1.msra.mxu0 %v465
        %519 = vmatprep.subr.mxu0 0.0
        %520 = vmatpush1.msra.mxu0 %v466
        %521 = vmatprep.subr.mxu0 0.0
        %522 = vmatpush1.msra.mxu0 %v467
        %523 = vmatprep.subr.mxu0 0.0
        %524 = vmatpush1.msra.mxu0 %v468
        %525 = vmatprep.subr.mxu0 0.0
        %526 = vmatpush1.msra.mxu0 %v469
        %527 = vmatprep.subr.mxu0 0.0
        %528 = vmatpush1.msra.mxu0 %v470
        %529 = vmatprep.subr.mxu0 0.0
        %530 = vmatpush1.msra.mxu0 %v471
        %531 = vmatprep.subr.mxu0 0.0
        %532 = vmatpush1.msra.mxu0 %v472
        %533 = vmatprep.subr.mxu0 0.0
        %534 = vmatpush1.msra.mxu0 %v473
        %535 = vmatprep.subr.mxu0 0.0
        %536 = vmatpush1.msra.mxu0 %v474
        %537 = vmatprep.subr.mxu0 0.0
        %538 = vmatpush1.msra.mxu0 %v475
        %539 = vmatprep.subr.mxu0 0.0
        %540 = vmatpush1.msra.mxu0 %v476
        %541 = vmatprep.mubr.f32.mxu0 %v442
        %542 = vmatmul.mubr.f32.gmra.mrb[0].mxu0 %v441
        %v543 = vpop.f32.mrb[0].mxu0
        %v544 = vadd.f32 0.0, %v543
        %v545 = vpop.f32.mrb[0].mxu0
        %546 = vmatprep.mubr.f32.mxu0 %v444
        %547 = vmatmul.mubr.f32.gmra.mrb[0].mxu0 %v443
        %v548 = vpop.f32.mrb[0].mxu0
        %v549 = vadd.f32 0.0, %v548
        %v550 = vpop.f32.mrb[0].mxu0
        %551 = vdwg.mxu0
        %vm552 = vcmask 130048
        %v553 = vsel %vm552, %v544, 0.0
        %v554 = vsel %vm552, %v549, 0.0
        %v555 = vadd.f32 %v553, %v554
        %v556 = vrot.slane %v555, 4
        %v557 = vadd.f32 %v555, %v556
        %v558 = vrot.slane %v557, 2
        %v559 = vadd.f32 %v557, %v558
        %v560 = vrot.slane %v559, 1
        %v561 = vadd.f32 %v559, %v560
        %v562 = vld [vmem:[%s3] sm:$0xff]
        %v563 = vld [vmem:[%s3 + $0x8] sm:$0xff]
        %v564 = vld [vmem:[%s4] sm:$0x1]
        %v566 = vsel %vm552, %v561, 0
        %568 = vmatprep.subr.mxu0 0.0
        %569 = vmatpush1.msra.mxu0 %v562
        %570 = vmatprep.subr.mxu0 0.0
        %571 = vmatpush1.msra.mxu0 %v563
        %572 = vmatprep.subr.mxu0 0.0
        %573 = vmatpush1.msra.mxu0 0.0
        %574 = vmatprep.subr.mxu0 0.0
        %575 = vmatpush1.msra.mxu0 0.0
        %576 = vmatprep.subr.mxu0 0.0
        %577 = vmatpush1.msra.mxu0 0.0
        %578 = vmatprep.subr.mxu0 0.0
        %579 = vmatpush1.msra.mxu0 0.0
        %580 = vmatprep.subr.mxu0 0.0
        %581 = vmatpush1.msra.mxu0 0.0
        %582 = vmatprep.subr.mxu0 0.0
        %583 = vmatpush1.msra.mxu0 0.0
        %584 = vmatprep.subr.mxu0 0.0
        %585 = vmatpush1.msra.mxu0 0.0
        %586 = vmatprep.subr.mxu0 0.0
        %587 = vmatpush1.msra.mxu0 0.0
        %588 = vmatprep.subr.mxu0 0.0
        %589 = vmatpush1.msra.mxu0 0.0
        %590 = vmatprep.subr.mxu0 0.0
        %591 = vmatpush1.msra.mxu0 0.0
        %592 = vmatprep.subr.mxu0 0.0
        %593 = vmatpush1.msra.mxu0 0.0
        %594 = vmatprep.subr.mxu0 0.0
        %595 = vmatpush1.msra.mxu0 0.0
        %596 = vmatprep.subr.mxu0 0.0
        %597 = vmatpush1.msra.mxu0 0.0
        %598 = vmatprep.subr.mxu0 0.0
        %599 = vmatpush1.msra.mxu0 0.0
        %600 = vmatprep.subr.mxu0 0.0
        %601 = vmatpush1.msra.mxu0 0.0
        %602 = vmatprep.subr.mxu0 0.0
        %603 = vmatpush1.msra.mxu0 0.0
        %604 = vmatprep.subr.mxu0 0.0
        %605 = vmatpush1.msra.mxu0 0.0
        %606 = vmatprep.subr.mxu0 0.0
        %607 = vmatpush1.msra.mxu0 0.0
        %608 = vmatprep.subr.mxu0 0.0
        %609 = vmatpush1.msra.mxu0 0.0
        %610 = vmatprep.subr.mxu0 0.0
        %611 = vmatpush1.msra.mxu0 0.0
        %612 = vmatprep.subr.mxu0 0.0
        %613 = vmatpush1.msra.mxu0 0.0
        %614 = vmatprep.subr.mxu0 0.0
        %615 = vmatpush1.msra.mxu0 0.0
        %616 = vmatprep.subr.mxu0 0.0
        %617 = vmatpush1.msra.mxu0 0.0
        %618 = vmatprep.subr.mxu0 0.0
        %619 = vmatpush1.msra.mxu0 0.0
        %620 = vmatprep.subr.mxu0 0.0
        %621 = vmatpush1.msra.mxu0 0.0
        %622 = vmatprep.subr.mxu0 0.0
        %623 = vmatpush1.msra.mxu0 0.0
        %624 = vmatprep.subr.mxu0 0.0
        %625 = vmatpush1.msra.mxu0 0.0
        %626 = vmatprep.subr.mxu0 0.0
        %627 = vmatpush1.msra.mxu0 0.0
        %628 = vmatprep.subr.mxu0 0.0
        %629 = vmatpush1.msra.mxu0 0.0
        %630 = vmatprep.subr.mxu0 0.0
        %631 = vmatpush1.msra.mxu0 0.0
        %632 = vmatprep.mubr.f32.mxu0 0.0
        %633 = vmatmul.mubr.f32.gmra.mrb[0].mxu0 %v566
        %v634 = vpop.f32.mrb[0].mxu0
        %v635 = vadd.f32 %v564, %v634
        %v636 = vpop.f32.mrb[0].mxu0
        %637 = vdwg.mxu0
        %v638 = vmax.f32 %v635, 0.0
        %v639 = vld [vmem:[%s439] sm:$0x1]
        %v640 = vmul.f32 %v638, %v639
        %v641 = vld [vmem:[%s436] sm:$0x1]
        %v642 = vadd.f32 %v640, %v641
        %v643 = vld [vmem:[%s5] sm:$0xff]
        %v644 = vld [vmem:[%s5 + $0x8] sm:$0xff]
        %v645 = vld [vmem:[%s6] sm:$0x1]
        %v647 = vsel %vm552, %v642, 0
        %649 = vmatprep.subr.mxu0 0.0
        %650 = vmatpush1.msra.mxu0 %v643
        %651 = vmatprep.subr.mxu0 0.0
        %652 = vmatpush1.msra.mxu0 %v644
        %653 = vmatprep.subr.mxu0 0.0
        %654 = vmatpush1.msra.mxu0 0.0
        %655 = vmatprep.subr.mxu0 0.0
        %656 = vmatpush1.msra.mxu0 0.0
        %657 = vmatprep.subr.mxu0 0.0
        %658 = vmatpush1.msra.mxu0 0.0
        %659 = vmatprep.subr.mxu0 0.0
        %660 = vmatpush1.msra.mxu0 0.0
        %661 = vmatprep.subr.mxu0 0.0
        %662 = vmatpush1.msra.mxu0 0.0
        %663 = vmatprep.subr.mxu0 0.0
        %664 = vmatpush1.msra.mxu0 0.0
        %665 = vmatprep.subr.mxu0 0.0
        %666 = vmatpush1.msra.mxu0 0.0
        %667 = vmatprep.subr.mxu0 0.0
        %668 = vmatpush1.msra.mxu0 0.0
        %669 = vmatprep.subr.mxu0 0.0
        %670 = vmatpush1.msra.mxu0 0.0
        %671 = vmatprep.subr.mxu0 0.0
        %672 = vmatpush1.msra.mxu0 0.0
        %673 = vmatprep.subr.mxu0 0.0
        %674 = vmatpush1.msra.mxu0 0.0
        %675 = vmatprep.subr.mxu0 0.0
        %676 = vmatpush1.msra.mxu0 0.0
        %677 = vmatprep.subr.mxu0 0.0
        %678 = vmatpush1.msra.mxu0 0.0
        %679 = vmatprep.subr.mxu0 0.0
        %680 = vmatpush1.msra.mxu0 0.0
        %681 = vmatprep.subr.mxu0 0.0
        %682 = vmatpush1.msra.mxu0 0.0
        %683 = vmatprep.subr.mxu0 0.0
        %684 = vmatpush1.msra.mxu0 0.0
        %685 = vmatprep.subr.mxu0 0.0
        %686 = vmatpush1.msra.mxu0 0.0
        %687 = vmatprep.subr.mxu0 0.0
        %688 = vmatpush1.msra.mxu0 0.0
        %689 = vmatprep.subr.mxu0 0.0
        %690 = vmatpush1.msra.mxu0 0.0
        %691 = vmatprep.subr.mxu0 0.0
        %692 = vmatpush1.msra.mxu0 0.0
        %693 = vmatprep.subr.mxu0 0.0
        %694 = vmatpush1.msra.mxu0 0.0
        %695 = vmatprep.subr.mxu0 0.0
        %696 = vmatpush1.msra.mxu0 0.0
        %697 = vmatprep.subr.mxu0 0.0
        %698 = vmatpush1.msra.mxu0 0.0
        %699 = vmatprep.subr.mxu0 0.0
        %700 = vmatpush1.msra.mxu0 0.0
        %701 = vmatprep.subr.mxu0 0.0
        %702 = vmatpush1.msra.mxu0 0.0
        %703 = vmatprep.subr.mxu0 0.0
        %704 = vmatpush1.msra.mxu0 0.0
        %705 = vmatprep.subr.mxu0 0.0
        %706 = vmatpush1.msra.mxu0 0.0
        %707 = vmatprep.subr.mxu0 0.0
        %708 = vmatpush1.msra.mxu0 0.0
        %709 = vmatprep.subr.mxu0 0.0
        %710 = vmatpush1.msra.mxu0 0.0
        %711 = vmatprep.subr.mxu0 0.0
        %712 = vmatpush1.msra.mxu0 0.0
        %713 = vmatprep.mubr.f32.mxu0 0.0
        %714 = vmatmul.mubr.f32.gmra.mrb[0].mxu0 %v647
        %v715 = vpop.f32.mrb[0].mxu0
        %v716 = vadd.f32 %v645, %v715
        %v717 = vpop.f32.mrb[0].mxu0
        %718 = vdwg.mxu0
        %v719 = vmax.f32 %v716, 0.0
        %v720 = vld [vmem:[%s8] sm:$0xff]
        %v721 = vld [vmem:[%s8 + $0x8] sm:$0xff]
        %v722 = vld [vmem:[%s8 + $0x10] sm:$0xff]
        %v723 = vld [vmem:[%s8 + $0x18] sm:$0xff]
        %v725 = vsel %vm552, %v719, 0
        %727 = vmatprep.subr.mxu0 %v721
        %728 = vmatpush1.msra.mxu0 %v720
        %729 = vmatprep.subr.mxu0 %v723
        %730 = vmatpush1.msra.mxu0 %v722
        %731 = vmatprep.subr.mxu0 0.0
        %732 = vmatpush1.msra.mxu0 0.0
        %733 = vmatprep.subr.mxu0 0.0
        %734 = vmatpush1.msra.mxu0 0.0
        %735 = vmatprep.subr.mxu0 0.0
        %736 = vmatpush1.msra.mxu0 0.0
        %737 = vmatprep.subr.mxu0 0.0
        %738 = vmatpush1.msra.mxu0 0.0
        %739 = vmatprep.subr.mxu0 0.0
        %740 = vmatpush1.msra.mxu0 0.0
        %741 = vmatprep.subr.mxu0 0.0
        %742 = vmatpush1.msra.mxu0 0.0
        %743 = vmatprep.subr.mxu0 0.0
        %744 = vmatpush1.msra.mxu0 0.0
        %745 = vmatprep.subr.mxu0 0.0
        %746 = vmatpush1.msra.mxu0 0.0
        %747 = vmatprep.subr.mxu0 0.0
        %748 = vmatpush1.msra.mxu0 0.0
        %749 = vmatprep.subr.mxu0 0.0
        %750 = vmatpush1.msra.mxu0 0.0
        %751 = vmatprep.subr.mxu0 0.0
        %752 = vmatpush1.msra.mxu0 0.0
        %753 = vmatprep.subr.mxu0 0.0
        %754 = vmatpush1.msra.mxu0 0.0
        %755 = vmatprep.subr.mxu0 0.0
        %756 = vmatpush1.msra.mxu0 0.0
        %757 = vmatprep.subr.mxu0 0.0
        %758 = vmatpush1.msra.mxu0 0.0
        %759 = vmatprep.subr.mxu0 0.0
        %760 = vmatpush1.msra.mxu0 0.0
        %761 = vmatprep.subr.mxu0 0.0
        %762 = vmatpush1.msra.mxu0 0.0
        %763 = vmatprep.subr.mxu0 0.0
        %764 = vmatpush1.msra.mxu0 0.0
        %765 = vmatprep.subr.mxu0 0.0
        %766 = vmatpush1.msra.mxu0 0.0
        %767 = vmatprep.subr.mxu0 0.0
        %768 = vmatpush1.msra.mxu0 0.0
        %769 = vmatprep.subr.mxu0 0.0
        %770 = vmatpush1.msra.mxu0 0.0
        %771 = vmatprep.subr.mxu0 0.0
        %772 = vmatpush1.msra.mxu0 0.0
        %773 = vmatprep.subr.mxu0 0.0
        %774 = vmatpush1.msra.mxu0 0.0
        %775 = vmatprep.subr.mxu0 0.0
        %776 = vmatpush1.msra.mxu0 0.0
        %777 = vmatprep.subr.mxu0 0.0
        %778 = vmatpush1.msra.mxu0 0.0
        %779 = vmatprep.subr.mxu0 0.0
        %780 = vmatpush1.msra.mxu0 0.0
        %781 = vmatprep.subr.mxu0 0.0
        %782 = vmatpush1.msra.mxu0 0.0
        %783 = vmatprep.subr.mxu0 0.0
        %784 = vmatpush1.msra.mxu0 0.0
        %785 = vmatprep.subr.mxu0 0.0
        %786 = vmatpush1.msra.mxu0 0.0
        %787 = vmatprep.subr.mxu0 0.0
        %788 = vmatpush1.msra.mxu0 0.0
        %789 = vmatprep.subr.mxu0 0.0
        %790 = vmatpush1.msra.mxu0 0.0
        %791 = vmatprep.mubr.f32.mxu0 0.0
        %792 = vmatmul.mubr.f32.gmra.mrb[0].mxu0 %v725
        %v793 = vpop.f32.mrb[0].mxu0
        %v794 = vadd.f32 0.0, %v793
        %v795 = vpop.f32.mrb[0].mxu0
        %v796 = vadd.f32 0.0, %v795
        %797 = vdwg.mxu0
        %v798 = vlaneseq
        %v799 = vshrl.u32 %v798, 7
        %v800 = vsub.s32 0, %v799
        %v801 = vrot.slane %v794, %v800
        %v802 = vlaneseq
        %v803 = vshrl.u32 %v802, 7
        %v804 = vsub.s32 0, %v803
        %v805 = vrot.slane %v796, %v804
        %v806 = vmul.f32 %v441, %v801
        %v807 = vmul.f32 %v442, %v805
        %v808 = vmul.f32 %v443, %v801
        %v809 = vmul.f32 %v444, %v805
        %v810 = vlaneseq
        %vm811 = vcmp.ge.s32.totalorder %v810, 0
        %vm812 = vcmp.lt.s32.totalorder %v810, 256
        %vm813 = vmand %vm811, %vm812
        %814 = vst.msk [vmem:[#allocation2] ss:$8 sm:$0x3] %vm813, 0.0
        %815 = vst.msk [vmem:[#allocation2] ss:$8 sm:$0x0] %vm813, 0.0
        %s816 = scalar_lea.vmem [#allocation2], 33
        %817 = vst.msk [vmem:[%s816] ss:$8 sm:$0x3] %vm813, 0.0
        %818 = vst.msk [vmem:[%s816] ss:$8 sm:$0x0] %vm813, 0.0
        %vm823 = vcmask 1040384
        %v824 = vrot.slane %v806, 7
        %v825 = vrot.slane %v807, 7
        %v826 = vrot.slane %v808, 7
        %v827 = vsel %vm823, %v824, %v826
        %v828 = vrot.slane %v809, 7
        %v829 = vsel %vm823, %v825, %v828
        %836 = vst [vmem:[#allocation2] sm:$0xfe] %v824
        %837 = vst [vmem:[#allocation2 + $0x8] sm:$0xfe] %v825
        %838 = vst [vmem:[#allocation2 + $0x10] sm:$0xff] %v827
        %839 = vst [vmem:[#allocation2 + $0x18] sm:$0xff] %v829
        %840 = vst [vmem:[#allocation2 + $0x20] sm:$0x1] %v826
        %841 = vst [vmem:[#allocation2 + $0x28] sm:$0x1] %v828
        %v842 = vld [vmem:[#allocation2] sm:$0xff]
        %v843 = vld [vmem:[#allocation2 + $0x8] sm:$0xff]
        %v844 = vld [vmem:[#allocation2 + $0x10] sm:$0xff]
        %v845 = vld [vmem:[#allocation2 + $0x18] sm:$0xff]
        %v846 = vpack.c.bf16 %v844, %v842
        %v847 = vpack.c.bf16 %v845, %v843
        %v848 = vld [vmem:[%s9] sm:$0xf]
        %v849 = vld [vmem:[%s9 + $0x4] sm:$0xf]
        %v850 = vld [vmem:[%s9 + $0x8] sm:$0xf]
        %v851 = vld [vmem:[%s9 + $0xc] sm:$0xf]
        %v852 = vld [vmem:[%s9 + $0x10] sm:$0xf]
        %v853 = vld [vmem:[%s9 + $0x14] sm:$0xf]
        %v854 = vld [vmem:[%s9 + $0x18] sm:$0xf]
        %v855 = vld [vmem:[%s9 + $0x1c] sm:$0xf]
        %v856 = vld [vmem:[%s9 + $0x20] sm:$0xf]
        %v857 = vld [vmem:[%s9 + $0x24] sm:$0xf]
        %v858 = vld [vmem:[%s9 + $0x28] sm:$0xf]
        %v859 = vld [vmem:[%s9 + $0x2c] sm:$0xf]
        %v860 = vld [vmem:[%s9 + $0x30] sm:$0xf]
        %v861 = vld [vmem:[%s9 + $0x34] sm:$0xf]
        %v862 = vld [vmem:[%s9 + $0x38] sm:$0xf]
        %v863 = vld [vmem:[%s9 + $0x3c] sm:$0xf]
        %v864 = vld [vmem:[%s9 + $0x40] sm:$0xf]
        %v865 = vld [vmem:[%s9 + $0x44] sm:$0xf]
        %v866 = vld [vmem:[%s9 + $0x48] sm:$0xf]
        %v867 = vld [vmem:[%s9 + $0x4c] sm:$0xf]
        %v868 = vld [vmem:[%s9 + $0x50] sm:$0xf]
        %v869 = vld [vmem:[%s9 + $0x54] sm:$0xf]
        %v870 = vld [vmem:[%s9 + $0x58] sm:$0xf]
        %v871 = vld [vmem:[%s9 + $0x5c] sm:$0xf]
        %v872 = vld [vmem:[%s9 + $0x60] sm:$0xf]
        %v873 = vld [vmem:[%s9 + $0x64] sm:$0xf]
        %v874 = vld [vmem:[%s9 + $0x68] sm:$0xf]
        %v875 = vld [vmem:[%s9 + $0x6c] sm:$0xf]
        %v876 = vld [vmem:[%s9 + $0x70] sm:$0xf]
        %v877 = vld [vmem:[%s9 + $0x74] sm:$0xf]
        %v878 = vld [vmem:[%s9 + $0x78] sm:$0xf]
        %v879 = vld [vmem:[%s9 + $0x7c] sm:$0xf]
        %v880 = vld [vmem:[#allocation2] sm:$0xfe]
        %v881 = vld [vmem:[#allocation2 + $0x8] sm:$0xfe]
        %v882 = vld [vmem:[#allocation2 + $0x20] sm:$0x1]
        %v883 = vld [vmem:[#allocation2 + $0x28] sm:$0x1]
        %v884 = vpack.c.bf16 %v844, %v880
        %v885 = vpack.c.bf16 %v845, %v881
        %v886 = vpack.c.bf16 %v882, %v882
        %v887 = vpack.c.bf16 %v883, %v883
        %s888 = scalar_lea.vmem %s9, 128
        %v889 = vld [vmem:[%s888] sm:$0xf]
        %v890 = vld [vmem:[%s888 + $0x4] sm:$0xf]
        %v891 = vld [vmem:[%s888 + $0x8] sm:$0xf]
        %v892 = vld [vmem:[%s888 + $0xc] sm:$0xf]
        %v893 = vld [vmem:[%s888 + $0x10] sm:$0xf]
        %v894 = vld [vmem:[%s888 + $0x14] sm:$0xf]
        %v895 = vld [vmem:[%s888 + $0x18] sm:$0xf]
        %v896 = vld [vmem:[%s888 + $0x1c] sm:$0xf]
        %v897 = vld [vmem:[%s888 + $0x20] sm:$0xf]
        %v898 = vld [vmem:[%s888 + $0x24] sm:$0xf]
        %v899 = vld [vmem:[%s888 + $0x28] sm:$0xf]
        %v900 = vld [vmem:[%s888 + $0x2c] sm:$0xf]
        %v901 = vld [vmem:[%s888 + $0x30] sm:$0xf]
        %v902 = vld [vmem:[%s888 + $0x34] sm:$0xf]
        %v903 = vld [vmem:[%s888 + $0x38] sm:$0xf]
        %v904 = vld [vmem:[%s888 + $0x3c] sm:$0xf]
        %v905 = vld [vmem:[%s888 + $0x40] sm:$0xf]
        %v906 = vld [vmem:[%s888 + $0x44] sm:$0xf]
        %v907 = vld [vmem:[%s888 + $0x48] sm:$0xf]
        %v908 = vld [vmem:[%s888 + $0x4c] sm:$0xf]
        %v909 = vld [vmem:[%s888 + $0x50] sm:$0xf]
        %v910 = vld [vmem:[%s888 + $0x54] sm:$0xf]
        %v911 = vld [vmem:[%s888 + $0x58] sm:$0xf]
        %v912 = vld [vmem:[%s888 + $0x5c] sm:$0xf]
        %v913 = vld [vmem:[%s888 + $0x60] sm:$0xf]
        %v914 = vld [vmem:[%s888 + $0x64] sm:$0xf]
        %v915 = vld [vmem:[%s888 + $0x68] sm:$0xf]
        %v916 = vld [vmem:[%s888 + $0x6c] sm:$0xf]
        %v917 = vld [vmem:[%s888 + $0x70] sm:$0xf]
        %v918 = vld [vmem:[%s888 + $0x74] sm:$0xf]
        %v919 = vld [vmem:[%s888 + $0x78] sm:$0xf]
        %v920 = vld [vmem:[%s888 + $0x7c] sm:$0xf]
        %vm921 = vsmask.f32 7424
        %v923 = vshrl.u32 %v884, 16
        %v925 = vshll.u32 %v884, 16
        %v927 = vrot.slane %v925, 1
        %v928 = vor.u32 %v923, %v927
        %v930 = vshll.u32 %v886, 16
        %v932 = vrot.slane %v930, 1
        %v933 = vsel %vm921, %v928, %v932
        %v935 = vshrl.u32 %v885, 16
        %v937 = vshll.u32 %v885, 16
        %v939 = vrot.slane %v937, 1
        %v940 = vor.u32 %v935, %v939
        %v942 = vshll.u32 %v887, 16
        %v944 = vrot.slane %v942, 1
        %v945 = vsel %vm921, %v940, %v944
        %v980 = vunpack.c.l.b16 %v889
        %v981 = vunpack.c.l.b16 %v890
        %v982 = vunpack.c.l.b16 %v891
        %v983 = vunpack.c.l.b16 %v892
        %v984 = vunpack.c.l.b16 %v893
        %v985 = vunpack.c.l.b16 %v894
        %v986 = vunpack.c.l.b16 %v895
        %v987 = vunpack.c.l.b16 %v896
        %v988 = vunpack.c.l.b16 %v897
        %v989 = vunpack.c.l.b16 %v898
        %v990 = vunpack.c.l.b16 %v899
        %v991 = vunpack.c.l.b16 %v900
        %v992 = vunpack.c.l.b16 %v901
        %v993 = vunpack.c.l.b16 %v902
        %v994 = vunpack.c.l.b16 %v903
        %v995 = vunpack.c.l.b16 %v904
        %v996 = vunpack.c.l.b16 %v905
        %v997 = vunpack.c.l.b16 %v906
        %v998 = vunpack.c.l.b16 %v907
        %v999 = vunpack.c.l.b16 %v908
        %v1000 = vunpack.c.l.b16 %v909
        %v1001 = vunpack.c.l.b16 %v910
        %v1002 = vunpack.c.l.b16 %v911
        %v1003 = vunpack.c.l.b16 %v912
        %v1004 = vunpack.c.l.b16 %v913
        %v1005 = vunpack.c.l.b16 %v914
        %v1006 = vunpack.c.l.b16 %v915
        %v1007 = vunpack.c.l.b16 %v916
        %v1008 = vunpack.c.l.b16 %v917
        %v1009 = vunpack.c.l.b16 %v918
        %v1010 = vunpack.c.l.b16 %v919
        %v1011 = vunpack.c.l.b16 %v920
        %v1012 = vpack.c.b16 %v981, %v980
        %v1013 = vpack.c.b16 %v983, %v982
        %v1014 = vpack.c.b16 %v985, %v984
        %v1015 = vpack.c.b16 %v987, %v986
        %v1016 = vpack.c.b16 %v989, %v988
        %v1017 = vpack.c.b16 %v991, %v990
        %v1018 = vpack.c.b16 %v993, %v992
        %v1019 = vpack.c.b16 %v995, %v994
        %v1020 = vpack.c.b16 %v997, %v996
        %v1021 = vpack.c.b16 %v999, %v998
        %v1022 = vpack.c.b16 %v1001, %v1000
        %v1023 = vpack.c.b16 %v1003, %v1002
        %v1024 = vpack.c.b16 %v1005, %v1004
        %v1025 = vpack.c.b16 %v1007, %v1006
        %v1026 = vpack.c.b16 %v1009, %v1008
        %v1027 = vpack.c.b16 %v1011, %v1010
        %1044 = vmatprep.subr.bf16.mxu0 0
        %1045 = vmatpush1.bf16.msra.mxu0 %v1012
        %1046 = vmatprep.subr.bf16.mxu0 0
        %1047 = vmatpush1.bf16.msra.mxu0 %v1013
        %1048 = vmatprep.subr.bf16.mxu0 0
        %1049 = vmatpush1.bf16.msra.mxu0 %v1014
        %1050 = vmatprep.subr.bf16.mxu0 0
        %1051 = vmatpush1.bf16.msra.mxu0 %v1015
        %1052 = vmatprep.subr.bf16.mxu0 0
        %1053 = vmatpush1.bf16.msra.mxu0 %v1016
        %1054 = vmatprep.subr.bf16.mxu0 0
        %1055 = vmatpush1.bf16.msra.mxu0 %v1017
        %1056 = vmatprep.subr.bf16.mxu0 0
        %1057 = vmatpush1.bf16.msra.mxu0 %v1018
        %1058 = vmatprep.subr.bf16.mxu0 0
        %1059 = vmatpush1.bf16.msra.mxu0 %v1019
        %1060 = vmatprep.subr.bf16.mxu0 0
        %1061 = vmatpush1.bf16.msra.mxu0 %v1020
        %1062 = vmatprep.subr.bf16.mxu0 0
        %1063 = vmatpush1.bf16.msra.mxu0 %v1021
        %1064 = vmatprep.subr.bf16.mxu0 0
        %1065 = vmatpush1.bf16.msra.mxu0 %v1022
        %1066 = vmatprep.subr.bf16.mxu0 0
        %1067 = vmatpush1.bf16.msra.mxu0 %v1023
        %1068 = vmatprep.subr.bf16.mxu0 0
        %1069 = vmatpush1.bf16.msra.mxu0 %v1024
        %1070 = vmatprep.subr.bf16.mxu0 0
        %1071 = vmatpush1.bf16.msra.mxu0 %v1025
        %1072 = vmatprep.subr.bf16.mxu0 0
        %1073 = vmatpush1.bf16.msra.mxu0 %v1026
        %1074 = vmatprep.subr.bf16.mxu0 0
        %1075 = vmatpush1.bf16.msra.mxu0 %v1027
        %1076 = vmatprep.mubr.bf16.mxu0 %v945
        %1077 = vmatmul.mubr.bf16.gmra.mrb[0].mxu0 %v933
        %v1078 = vpop.f32.mrb[0].mxu0
        %v1079 = vadd.f32 0.0, %v1078
        %v1080 = vpop.f32.mrb[0].mxu0
        %v1081 = vpop.f32.mrb[0].mxu0
        %v1082 = vadd.f32 0.0, %v1081
        %v1083 = vpop.f32.mrb[0].mxu0
        %1084 = vdwg.mxu0
        %v1117 = vunpack.c.l.b16 %v848
        %v1118 = vunpack.c.l.b16 %v849
        %v1119 = vunpack.c.l.b16 %v850
        %v1120 = vunpack.c.l.b16 %v851
        %v1121 = vunpack.c.l.b16 %v852
        %v1122 = vunpack.c.l.b16 %v853
        %v1123 = vunpack.c.l.b16 %v854
        %v1124 = vunpack.c.l.b16 %v855
        %v1125 = vunpack.c.l.b16 %v856
        %v1126 = vunpack.c.l.b16 %v857
        %v1127 = vunpack.c.l.b16 %v858
        %v1128 = vunpack.c.l.b16 %v859
        %v1129 = vunpack.c.l.b16 %v860
        %v1130 = vunpack.c.l.b16 %v861
        %v1131 = vunpack.c.l.b16 %v862
        %v1132 = vunpack.c.l.b16 %v863
        %v1133 = vunpack.c.l.b16 %v864
        %v1134 = vunpack.c.l.b16 %v865
        %v1135 = vunpack.c.l.b16 %v866
        %v1136 = vunpack.c.l.b16 %v867
        %v1137 = vunpack.c.l.b16 %v868
        %v1138 = vunpack.c.l.b16 %v869
        %v1139 = vunpack.c.l.b16 %v870
        %v1140 = vunpack.c.l.b16 %v871
        %v1141 = vunpack.c.l.b16 %v872
        %v1142 = vunpack.c.l.b16 %v873
        %v1143 = vunpack.c.l.b16 %v874
        %v1144 = vunpack.c.l.b16 %v875
        %v1145 = vunpack.c.l.b16 %v876
        %v1146 = vunpack.c.l.b16 %v877
        %v1147 = vunpack.c.l.b16 %v878
        %v1148 = vunpack.c.l.b16 %v879
        %v1149 = vpack.c.b16 %v1118, %v1117
        %v1150 = vpack.c.b16 %v1120, %v1119
        %v1151 = vpack.c.b16 %v1122, %v1121
        %v1152 = vpack.c.b16 %v1124, %v1123
        %v1153 = vpack.c.b16 %v1126, %v1125
        %v1154 = vpack.c.b16 %v1128, %v1127
        %v1155 = vpack.c.b16 %v1130, %v1129
        %v1156 = vpack.c.b16 %v1132, %v1131
        %v1157 = vpack.c.b16 %v1134, %v1133
        %v1158 = vpack.c.b16 %v1136, %v1135
        %v1159 = vpack.c.b16 %v1138, %v1137
        %v1160 = vpack.c.b16 %v1140, %v1139
        %v1161 = vpack.c.b16 %v1142, %v1141
        %v1162 = vpack.c.b16 %v1144, %v1143
        %v1163 = vpack.c.b16 %v1146, %v1145
        %v1164 = vpack.c.b16 %v1148, %v1147
        %1181 = vmatprep.subr.bf16.mxu0 0
        %1182 = vmatpush1.bf16.msra.mxu0 %v1149
        %1183 = vmatprep.subr.bf16.mxu0 0
        %1184 = vmatpush1.bf16.msra.mxu0 %v1150
        %1185 = vmatprep.subr.bf16.mxu0 0
        %1186 = vmatpush1.bf16.msra.mxu0 %v1151
        %1187 = vmatprep.subr.bf16.mxu0 0
        %1188 = vmatpush1.bf16.msra.mxu0 %v1152
        %1189 = vmatprep.subr.bf16.mxu0 0
        %1190 = vmatpush1.bf16.msra.mxu0 %v1153
        %1191 = vmatprep.subr.bf16.mxu0 0
        %1192 = vmatpush1.bf16.msra.mxu0 %v1154
        %1193 = vmatprep.subr.bf16.mxu0 0
        %1194 = vmatpush1.bf16.msra.mxu0 %v1155
        %1195 = vmatprep.subr.bf16.mxu0 0
        %1196 = vmatpush1.bf16.msra.mxu0 %v1156
        %1197 = vmatprep.subr.bf16.mxu0 0
        %1198 = vmatpush1.bf16.msra.mxu0 %v1157
        %1199 = vmatprep.subr.bf16.mxu0 0
        %1200 = vmatpush1.bf16.msra.mxu0 %v1158
        %1201 = vmatprep.subr.bf16.mxu0 0
        %1202 = vmatpush1.bf16.msra.mxu0 %v1159
        %1203 = vmatprep.subr.bf16.mxu0 0
        %1204 = vmatpush1.bf16.msra.mxu0 %v1160
        %1205 = vmatprep.subr.bf16.mxu0 0
        %1206 = vmatpush1.bf16.msra.mxu0 %v1161
        %1207 = vmatprep.subr.bf16.mxu0 0
        %1208 = vmatpush1.bf16.msra.mxu0 %v1162
        %1209 = vmatprep.subr.bf16.mxu0 0
        %1210 = vmatpush1.bf16.msra.mxu0 %v1163
        %1211 = vmatprep.subr.bf16.mxu0 0
        %1212 = vmatpush1.bf16.msra.mxu0 %v1164
        %1213 = vmatprep.mubr.bf16.mxu0 %v847
        %1214 = vmatmul.mubr.bf16.gmra.mrb[0].mxu0 %v846
        %v1215 = vpop.f32.mrb[0].mxu0
        %v1216 = vadd.f32 %v1079, %v1215
        %v1217 = vpop.f32.mrb[0].mxu0
        %v1218 = vpop.f32.mrb[0].mxu0
        %v1219 = vadd.f32 %v1082, %v1218
        %v1220 = vpop.f32.mrb[0].mxu0
        %1221 = vdwg.mxu0
        %v1222 = vld [vmem:[#allocation2] sm:$0xfc]
        %v1223 = vld [vmem:[#allocation2 + $0x8] sm:$0xfc]
        %v1224 = vld [vmem:[#allocation2 + $0x20] sm:$0x3]
        %v1225 = vld [vmem:[#allocation2 + $0x28] sm:$0x3]
        %v1226 = vpack.c.bf16 %v844, %v1222
        %v1227 = vpack.c.bf16 %v845, %v1223
        %v1228 = vpack.c.bf16 %v1224, %v1224
        %v1229 = vpack.c.bf16 %v1225, %v1225
        %s1230 = scalar_lea.vmem %s9, 256
        %v1231 = vld [vmem:[%s1230] sm:$0xf]
        %v1232 = vld [vmem:[%s1230 + $0x4] sm:$0xf]
        %v1233 = vld [vmem:[%s1230 + $0x8] sm:$0xf]
        %v1234 = vld [vmem:[%s1230 + $0xc] sm:$0xf]
        %v1235 = vld [vmem:[%s1230 + $0x10] sm:$0xf]
        %v1236 = vld [vmem:[%s1230 + $0x14] sm:$0xf]
        %v1237 = vld [vmem:[%s1230 + $0x18] sm:$0xf]
        %v1238 = vld [vmem:[%s1230 + $0x1c] sm:$0xf]
        %v1239 = vld [vmem:[%s1230 + $0x20] sm:$0xf]
        %v1240 = vld [vmem:[%s1230 + $0x24] sm:$0xf]
        %v1241 = vld [vmem:[%s1230 + $0x28] sm:$0xf]
        %v1242 = vld [vmem:[%s1230 + $0x2c] sm:$0xf]
        %v1243 = vld [vmem:[%s1230 + $0x30] sm:$0xf]
        %v1244 = vld [vmem:[%s1230 + $0x34] sm:$0xf]
        %v1245 = vld [vmem:[%s1230 + $0x38] sm:$0xf]
        %v1246 = vld [vmem:[%s1230 + $0x3c] sm:$0xf]
        %v1247 = vld [vmem:[%s1230 + $0x40] sm:$0xf]
        %v1248 = vld [vmem:[%s1230 + $0x44] sm:$0xf]
        %v1249 = vld [vmem:[%s1230 + $0x48] sm:$0xf]
        %v1250 = vld [vmem:[%s1230 + $0x4c] sm:$0xf]
        %v1251 = vld [vmem:[%s1230 + $0x50] sm:$0xf]
        %v1252 = vld [vmem:[%s1230 + $0x54] sm:$0xf]
        %v1253 = vld [vmem:[%s1230 + $0x58] sm:$0xf]
        %v1254 = vld [vmem:[%s1230 + $0x5c] sm:$0xf]
        %v1255 = vld [vmem:[%s1230 + $0x60] sm:$0xf]
        %v1256 = vld [vmem:[%s1230 + $0x64] sm:$0xf]
        %v1257 = vld [vmem:[%s1230 + $0x68] sm:$0xf]
        %v1258 = vld [vmem:[%s1230 + $0x6c] sm:$0xf]
        %v1259 = vld [vmem:[%s1230 + $0x70] sm:$0xf]
        %v1260 = vld [vmem:[%s1230 + $0x74] sm:$0xf]
        %v1261 = vld [vmem:[%s1230 + $0x78] sm:$0xf]
        %v1262 = vld [vmem:[%s1230 + $0x7c] sm:$0xf]
        %vm1267 = vcmask 1046528
        %v1268 = vrot.slane %v1226, 1
        %v1269 = vrot.slane %v1228, 1
        %v1270 = vsel %vm1267, %v1268, %v1269
        %v1271 = vrot.slane %v1227, 1
        %v1272 = vrot.slane %v1229, 1
        %v1273 = vsel %vm1267, %v1271, %v1272
        %v1308 = vunpack.c.l.b16 %v1231
        %v1309 = vunpack.c.l.b16 %v1232
        %v1310 = vunpack.c.l.b16 %v1233
        %v1311 = vunpack.c.l.b16 %v1234
        %v1312 = vunpack.c.l.b16 %v1235
        %v1313 = vunpack.c.l.b16 %v1236
        %v1314 = vunpack.c.l.b16 %v1237
        %v1315 = vunpack.c.l.b16 %v1238
        %v1316 = vunpack.c.l.b16 %v1239
        %v1317 = vunpack.c.l.b16 %v1240
        %v1318 = vunpack.c.l.b16 %v1241
        %v1319 = vunpack.c.l.b16 %v1242
        %v1320 = vunpack.c.l.b16 %v1243
        %v1321 = vunpack.c.l.b16 %v1244
        %v1322 = vunpack.c.l.b16 %v1245
        %v1323 = vunpack.c.l.b16 %v1246
        %v1324 = vunpack.c.l.b16 %v1247
        %v1325 = vunpack.c.l.b16 %v1248
        %v1326 = vunpack.c.l.b16 %v1249
        %v1327 = vunpack.c.l.b16 %v1250
        %v1328 = vunpack.c.l.b16 %v1251
        %v1329 = vunpack.c.l.b16 %v1252
        %v1330 = vunpack.c.l.b16 %v1253
        %v1331 = vunpack.c.l.b16 %v1254
        %v1332 = vunpack.c.l.b16 %v1255
        %v1333 = vunpack.c.l.b16 %v1256
        %v1334 = vunpack.c.l.b16 %v1257
        %v1335 = vunpack.c.l.b16 %v1258
        %v1336 = vunpack.c.l.b16 %v1259
        %v1337 = vunpack.c.l.b16 %v1260
        %v1338 = vunpack.c.l.b16 %v1261
        %v1339 = vunpack.c.l.b16 %v1262
        %v1340 = vpack.c.b16 %v1309, %v1308
        %v1341 = vpack.c.b16 %v1311, %v1310
        %v1342 = vpack.c.b16 %v1313, %v1312
        %v1343 = vpack.c.b16 %v1315, %v1314
        %v1344 = vpack.c.b16 %v1317, %v1316
        %v1345 = vpack.c.b16 %v1319, %v1318
        %v1346 = vpack.c.b16 %v1321, %v1320
        %v1347 = vpack.c.b16 %v1323, %v1322
        %v1348 = vpack.c.b16 %v1325, %v1324
        %v1349 = vpack.c.b16 %v1327, %v1326
        %v1350 = vpack.c.b16 %v1329, %v1328
        %v1351 = vpack.c.b16 %v1331, %v1330
        %v1352 = vpack.c.b16 %v1333, %v1332
        %v1353 = vpack.c.b16 %v1335, %v1334
        %v1354 = vpack.c.b16 %v1337, %v1336
        %v1355 = vpack.c.b16 %v1339, %v1338
        %1372 = vmatprep.subr.bf16.mxu0 0
        %1373 = vmatpush1.bf16.msra.mxu0 %v1340
        %1374 = vmatprep.subr.bf16.mxu0 0
        %1375 = vmatpush1.bf16.msra.mxu0 %v1341
        %1376 = vmatprep.subr.bf16.mxu0 0
        %1377 = vmatpush1.bf16.msra.mxu0 %v1342
        %1378 = vmatprep.subr.bf16.mxu0 0
        %1379 = vmatpush1.bf16.msra.mxu0 %v1343
        %1380 = vmatprep.subr.bf16.mxu0 0
        %1381 = vmatpush1.bf16.msra.mxu0 %v1344
        %1382 = vmatprep.subr.bf16.mxu0 0
        %1383 = vmatpush1.bf16.msra.mxu0 %v1345
        %1384 = vmatprep.subr.bf16.mxu0 0
        %1385 = vmatpush1.bf16.msra.mxu0 %v1346
        %1386 = vmatprep.subr.bf16.mxu0 0
        %1387 = vmatpush1.bf16.msra.mxu0 %v1347
        %1388 = vmatprep.subr.bf16.mxu0 0
        %1389 = vmatpush1.bf16.msra.mxu0 %v1348
        %1390 = vmatprep.subr.bf16.mxu0 0
        %1391 = vmatpush1.bf16.msra.mxu0 %v1349
        %1392 = vmatprep.subr.bf16.mxu0 0
        %1393 = vmatpush1.bf16.msra.mxu0 %v1350
        %1394 = vmatprep.subr.bf16.mxu0 0
        %1395 = vmatpush1.bf16.msra.mxu0 %v1351
        %1396 = vmatprep.subr.bf16.mxu0 0
        %1397 = vmatpush1.bf16.msra.mxu0 %v1352
        %1398 = vmatprep.subr.bf16.mxu0 0
        %1399 = vmatpush1.bf16.msra.mxu0 %v1353
        %1400 = vmatprep.subr.bf16.mxu0 0
        %1401 = vmatpush1.bf16.msra.mxu0 %v1354
        %1402 = vmatprep.subr.bf16.mxu0 0
        %1403 = vmatpush1.bf16.msra.mxu0 %v1355
        %1404 = vmatprep.mubr.bf16.mxu0 %v1273
        %1405 = vmatmul.mubr.bf16.gmra.mrb[0].mxu0 %v1270
        %v1406 = vpop.f32.mrb[0].mxu0
        %v1407 = vadd.f32 0.0, %v1406
        %v1408 = vpop.f32.mrb[0].mxu0
        %v1409 = vpop.f32.mrb[0].mxu0
        %v1410 = vadd.f32 0.0, %v1409
        %v1411 = vpop.f32.mrb[0].mxu0
        %1412 = vdwg.mxu0
        %v1413 = vadd.f32 %v1216, %v1407
        %v1414 = vadd.f32 %v1219, %v1410
        %v1415 = vpack.c.bf16 %v1414, %v1413
        %v1416 = vld [vmem:[%s10] sm:$0xf]
        %v1417 = vld [vmem:[%s10 + $0x4] sm:$0xf]
        %v1418 = vld [vmem:[%s10 + $0x8] sm:$0xf]
        %v1419 = vld [vmem:[%s10 + $0xc] sm:$0xf]
        %v1420 = vld [vmem:[%s10 + $0x10] sm:$0xf]
        %v1421 = vld [vmem:[%s10 + $0x14] sm:$0xf]
        %v1422 = vld [vmem:[%s10 + $0x18] sm:$0xf]
        %v1423 = vld [vmem:[%s10 + $0x1c] sm:$0xf]
        %v1432 = vunpack.c.l.b16 %v1416
        %v1433 = vunpack.c.l.b16 %v1417
        %v1434 = vunpack.c.l.b16 %v1418
        %v1435 = vunpack.c.l.b16 %v1419
        %v1436 = vunpack.c.l.b16 %v1420
        %v1437 = vunpack.c.l.b16 %v1421
        %v1438 = vunpack.c.l.b16 %v1422
        %v1439 = vunpack.c.l.b16 %v1423
        %v1440 = vpack.c.b16 %v1433, %v1432
        %v1441 = vpack.c.b16 %v1435, %v1434
        %v1442 = vpack.c.b16 %v1437, %v1436
        %v1443 = vpack.c.b16 %v1439, %v1438
        %vm1448 = vcmask 523264
        %v1450 = vsel %vm1448, %v1415, 0
        %1452 = vmatprep.subr.bf16.mxu0 0
        %1453 = vmatpush1.bf16.msra.mxu0 %v1440
        %1454 = vmatprep.subr.bf16.mxu0 0
        %1455 = vmatpush1.bf16.msra.mxu0 %v1441
        %1456 = vmatprep.subr.bf16.mxu0 0
        %1457 = vmatpush1.bf16.msra.mxu0 %v1442
        %1458 = vmatprep.subr.bf16.mxu0 0
        %1459 = vmatpush1.bf16.msra.mxu0 %v1443
        %1460 = vmatprep.subr.bf16.mxu0 0
        %1461 = vmatpush1.bf16.msra.mxu0 0
        %1462 = vmatprep.subr.bf16.mxu0 0
        %1463 = vmatpush1.bf16.msra.mxu0 0
        %1464 = vmatprep.subr.bf16.mxu0 0
        %1465 = vmatpush1.bf16.msra.mxu0 0
        %1466 = vmatprep.subr.bf16.mxu0 0
        %1467 = vmatpush1.bf16.msra.mxu0 0
        %1468 = vmatprep.subr.bf16.mxu0 0
        %1469 = vmatpush1.bf16.msra.mxu0 0
        %1470 = vmatprep.subr.bf16.mxu0 0
        %1471 = vmatpush1.bf16.msra.mxu0 0
        %1472 = vmatprep.subr.bf16.mxu0 0
        %1473 = vmatpush1.bf16.msra.mxu0 0
        %1474 = vmatprep.subr.bf16.mxu0 0
        %1475 = vmatpush1.bf16.msra.mxu0 0
        %1476 = vmatprep.subr.bf16.mxu0 0
        %1477 = vmatpush1.bf16.msra.mxu0 0
        %1478 = vmatprep.subr.bf16.mxu0 0
        %1479 = vmatpush1.bf16.msra.mxu0 0
        %1480 = vmatprep.subr.bf16.mxu0 0
        %1481 = vmatpush1.bf16.msra.mxu0 0
        %1482 = vmatprep.subr.bf16.mxu0 0
        %1483 = vmatpush1.bf16.msra.mxu0 0
        %1484 = vmatprep.mubr.bf16.mxu0 0
        %1485 = vmatmul.mubr.bf16.gmra.mrb[0].mxu0 %v1450
        %v1486 = vpop.f32.mrb[0].mxu0
        %v1487 = vadd.f32 0.0, %v1486
        %v1488 = vpop.f32.mrb[0].mxu0
        %v1489 = vpop.f32.mrb[0].mxu0
        %v1490 = vadd.f32 0.0, %v1489
        %v1491 = vpop.f32.mrb[0].mxu0
        %1492 = vdwg.mxu0
        %v1493 = vld [vmem:[%s11] sm:$0xff]
        %v1494 = vld [vmem:[%s11 + $0x8] sm:$0xff]
        %v1495 = vadd.f32 %v1487, %v1493
        %v1496 = vadd.f32 %v1490, %v1494
        %v1497 = vmax.f32 %v1495, 0.0
        %v1498 = vmax.f32 %v1496, 0.0
        %1499 = vst [vmem:[%s428] sm:$0xff] %v1497
        %1500 = vst [vmem:[%s428 + $0x8] sm:$0xff] %v1498
        %s1501 = sand.u32 %s301, 1
        %s1502 = scalar_lea.sflag [#allocation4], %s1501
        %s1503 = sand.u32 %s301, 1
        %s1504 = smul.addr %s1503, 16
        %s1505 = scalar_lea.vmem [#allocation3], %s1504
        // Predicated region
        $region69: #{tpu_custom_call.1} parent=67 // pred_check
          %p1506 = pneg %p311
        $region70: #{tpu_custom_call.1} parent=67 // pred_check_branch
          %1508 = sbr.rel (%p1506) target = $region72
        $region71: #{tpu_custom_call.1} parent=67 // pred_region
          %s1510 = ssub.s32 256, 256
          %1511 = vsyncadd %s1502, %s1510
          %s1512 = smul.addr %s26, 2
          %s1513 = smul.addr %s1512, 128
          %s1514 = scalar_lea.hbm %s12, %s1513
          %s1515 = sshll.u32 %s1505, 4
          %s1516 = int_to_ptr.vmem [resolvable:$true] %s1515
          %1521 = dma.vmem_to_hbm [thread:$0]  %s1516, 256, %s1514, %s1502, 128, 128, 8
        $region72: #{tpu_custom_call.1} parent=67 // pred_fallthru
          _
      $region68: #{tpu_custom_call.1} parent=5 // pred_fallthru
        _
      %p1522 = scmp.le.s32.totalorder 2, %s21
      // Predicated region
      $region73: #{tpu_custom_call.1} parent=5 // pred_check
        %p1523 = pneg %p1522
      $region74: #{tpu_custom_call.1} parent=5 // pred_check_branch
        %1525 = sbr.rel (%p1523) target = $region76
      $region75: #{tpu_custom_call.1} parent=5 // pred_region
        %s1526 = ssub.s32 %s21, 2
        // Predicated region
        $region77: #{tpu_custom_call.1} parent=75 // pred_check
          %p1527 = pneg %p317
        $region78: #{tpu_custom_call.1} parent=75 // pred_check_branch
          %1529 = sbr.rel (%p1527) target = $region80
        $region79: #{tpu_custom_call.1} parent=75 // pred_region
          %s1530 = sand.u32 %s302, 1
          %s1531 = scalar_lea.sflag [#allocation4], %s1530
          %s1532 = sand.u32 %s302, 1
          %s1533 = smul.addr %s1532, 16
          %s1534 = scalar_lea.vmem [#allocation3], %s1533
          %1535 = dma.done %s1531, 256
        $region80: #{tpu_custom_call.1} parent=75 // pred_fallthru
          _
      $region76: #{tpu_custom_call.1} parent=5 // pred_fallthru
        _
    $region6: #{tpu_custom_call.1} parent=1 // loop_footer
      %s25 = sadd.s32 1, %s21
    $region7: #{tpu_custom_call.1} parent=1 // loop_footer_branch
      %20 = sbr.rel target = $region3
    $region8: #{tpu_custom_call.1} parent=1 // loop_exit
      _
    %1536 = vsyncpa [#allocation4], 1
    %s1537 = scalar_lea.sflag [#allocation4], 1
    %1538 = vsyncpa %s1537, 1

</llo_original>
